<compile_context>
chip_gen: v6e
topology: v6e:2x2x1
jax: 0.10.0
libtpu: 0.0.40
codegen_flags: <defaults>
</compile_context>

<pallas_src>
import math
from functools import partial

import jax
import jax.numpy as jnp
from jax import lax
from jax.experimental import pallas as pl
from jax.experimental.pallas import tpu as pltpu


# ---------------------------------------------------------------------------
# Kernel 1: QKV projection + rotary embedding, head-major output.
# ---------------------------------------------------------------------------
def qkv_rope_kernel(x_ref, wqkv_ref, cos_ref, sin_ref, q_ref, k_ref, v_ref,
                    *, nhead, head_dim, scale):
    Dh = head_dim
    D = nhead * Dh
    x = x_ref[...]                                                        # (Tt, D)
    qkv = jnp.dot(x, wqkv_ref[...], preferred_element_type=jnp.float32)   # (Tt, 3D) f32
    cos = cos_ref[...]                                                    # (Tt, Dh) = [cos, cos]
    sin = sin_ref[...]                                                    # (Tt, Dh) = [-sin, +sin]

    def rope(t):  # non-interleaved rotary on an f32 (Tt, Dh) head slice
        if Dh % 128 == 0:
            # rotate-by-half via XLU roll (shift == Dh//2 so rotation direction is irrelevant)
            return t * cos + pltpu.roll(t, Dh // 2, 1) * sin
        # lane-unaligned head dims: safe slice/concat fallback
        t1, t2 = t[:, :Dh // 2], t[:, Dh // 2:]
        c, s = cos[:, :Dh // 2], sin[:, Dh // 2:]
        return jnp.concatenate([t1 * c - t2 * s, t1 * s + t2 * c], axis=-1)

    for h in range(nhead):            # static, small; each head writes its own slab slice
        off = h * Dh
        q_ref[h] = (rope(qkv[:, off:off + Dh]) * scale).astype(q_ref.dtype)
        k_ref[h] = rope(qkv[:, D + off:D + off + Dh]).astype(k_ref.dtype)
        v_ref[h] = qkv[:, 2 * D + off:2 * D + off + Dh].astype(v_ref.dtype)


# ---------------------------------------------------------------------------
# Kernel 2: banded flash attention + out_proj + RMSNorm1 + GatedMlp + RMSNorm2.
# ---------------------------------------------------------------------------
def attn_mlp_kernel(x_ref, q_ref, k_ref, v_ref, wout_ref, bout_ref, g1_ref,
                    wfc1_ref, wfc2_ref, g2_ref, o_ref, m_ref, l_ref, acc_ref,
                    *, nhead, head_dim, window, alpha, eps, hff,
                    tq, tk, t_blocks, left_blocks, approx_recip):
    qi = pl.program_id(1)
    kb = pl.program_id(2)
    nkb = pl.num_programs(2)
    Dh = head_dim
    D = nhead * Dh

    @pl.when(kb == 0)
    def _init():
        m_ref[...] = jnp.full(m_ref.shape, -jnp.inf, m_ref.dtype)
        l_ref[...] = jnp.zeros(l_ref.shape, l_ref.dtype)
        acc_ref[...] = jnp.zeros(acc_ref.shape, acc_ref.dtype)

    kv_block = qi - left_blocks + kb                    # un-clamped band block index

    @pl.when(jnp.logical_and(kv_block >= 0, kv_block < t_blocks))
    def _band_step():
        q = q_ref[...]                                  # (H, Tq, Dh), pre-scaled by 1/sqrt(Dh)
        k = k_ref[...]                                  # (H, Tk, Dh)
        v = v_ref[...]
        s = jnp.einsum("hqd,hkd->hqk", q, k,
                       preferred_element_type=jnp.float32)   # (H, Tq, Tk) f32
        # per-tile sliding-window mask (no (T,T) buffer)
        qpos = qi * tq + lax.broadcasted_iota(jnp.int32, (tq, tk), 0)
        kpos = kv_block * tk + lax.broadcasted_iota(jnp.int32, (tq, tk), 1)
        d = kpos - qpos
        allowed = (d >= -window[0]) & (d <= window[1])
        s = jnp.where(allowed[None], s, -1e30)

        m_prev = m_ref[...]
        m_new = jnp.maximum(m_prev, s.max(axis=-1, keepdims=True))
        corr = jnp.exp(m_prev - m_new)
        p = jnp.exp(s - m_new)
        l_ref[...] = corr * l_ref[...] + p.sum(axis=-1, keepdims=True)
        acc_ref[...] = corr * acc_ref[...] + jnp.einsum(
            "hqk,hkd->hqd", p.astype(v.dtype), v, preferred_element_type=jnp.float32)
        m_ref[...] = m_new

    @pl.when(kb == nkb - 1)
    def _finalize():
        attn = acc_ref[...] * pl.reciprocal(l_ref[...], approx=approx_recip)  # (H,Tq,Dh) f32
        # out_proj folded over heads: sum_h attn[h] @ Wout[h*Dh:(h+1)*Dh]  (no transpose/concat)
        proj = jnp.zeros((tq, D), jnp.float32)
        for h in range(nhead):
            proj = proj + jnp.dot(attn[h].astype(wout_ref.dtype),
                                  wout_ref[h * Dh:(h + 1) * Dh, :],
                                  preferred_element_type=jnp.float32)
        proj = proj + bout_ref[...]                                           # (1, D) f32

        xf = x_ref[...].astype(jnp.float32)
        h1 = proj + alpha * xf
        y1 = h1 * lax.rsqrt(jnp.mean(h1 * h1, axis=-1, keepdims=True) + eps) * g1_ref[...]

        ff = jnp.dot(y1.astype(wfc1_ref.dtype), wfc1_ref[...],
                     preferred_element_type=jnp.float32)                      # (Tq, 2H) f32
        a, gate = ff[:, :hff], ff[:, hff:]
        act = a * (gate * jax.nn.sigmoid(gate))
        ffo = jnp.dot(act.astype(wfc2_ref.dtype), wfc2_ref[...],
                      preferred_element_type=jnp.float32)                     # (Tq, D) f32
        h2 = ffo + alpha * y1
        o_ref[...] = (h2 * lax.rsqrt(jnp.mean(h2 * h2, axis=-1, keepdims=True) + eps)
                      * g2_ref[...]).astype(o_ref.dtype)


# ---------------------------------------------------------------------------
# Wrapper
# ---------------------------------------------------------------------------
def transformer_encoder_layer(x, params, *, nhead, attn_window, deepnorm_alpha,
                              eps=1e-5, compute_dtype=jnp.bfloat16, seq_tile=128):
    N, T, D = x.shape
    assert D % nhead == 0, "d_model must be divisible by nhead"
    Dh = D // nhead
    assert Dh % 2 == 0, "head_dim must be even for rotary embedding"
    Hff = params["wfc2_t"].shape[0]
    w0, w1 = int(attn_window[0]), int(attn_window[1])

    tq = seq_tile if (T % seq_tile == 0) else T          # sequence tile
    tk = tq
    assert T % tq == 0
    t_blocks = T // tk
    left = -(-w0 // tk)                                  # ceil(w0 / tk)
    kb_count = left + (tq - 1 + w1) // tk + 1            # k-tiles intersecting one q-tile's band

    cdt = jnp.dtype(compute_dtype)
    xc = x.astype(cdt)
    wqkv = params["wqkv_t"].astype(cdt)
    wout = params["wout_t"].astype(cdt)
    wfc1 = params["wfc1_t"].astype(cdt)
    wfc2 = params["wfc2_t"].astype(cdt)
    bout = params["bout"].astype(jnp.float32)
    g1 = params["g1"].astype(jnp.float32)
    g2 = params["g2"].astype(jnp.float32)

    # rotary tables at full head width: [cos, cos] and [-sin, +sin] (kept in f32)
    cos_h = params["cos"].astype(jnp.float32)            # (T, Dh//2)
    sin_h = params["sin"].astype(jnp.float32)
    cos_cat = jnp.concatenate([cos_h, cos_h], axis=-1)   # (T, Dh)
    sin_sgn = jnp.concatenate([-sin_h, sin_h], axis=-1)  # (T, Dh)

    vmem_limit = 48 * 1024 * 1024                        # fits v5e/v6e/v7x with headroom

    # ---- call 1: qkv + rope ------------------------------------------------
    qkv_call = pl.pallas_call(
        partial(qkv_rope_kernel, nhead=nhead, head_dim=Dh, scale=1.0 / math.sqrt(Dh)),
        out_shape=tuple(jax.ShapeDtypeStruct((N, nhead, T, Dh), cdt) for _ in range(3)),
        grid_spec=pltpu.PrefetchScalarGridSpec(
            num_scalar_prefetch=0,
            grid=(N, T // tq),
            in_specs=[
                pl.BlockSpec((pl.Squeezed(), tq, D), lambda n, t: (n, t, 0)),   # x
                pl.BlockSpec((D, 3 * D), lambda n, t: (0, 0)),                  # Wqkv^T (resident)
                pl.BlockSpec((tq, Dh), lambda n, t: (t, 0)),                    # cos
                pl.BlockSpec((tq, Dh), lambda n, t: (t, 0)),                    # sin (signed)
            ],
            out_specs=tuple(
                pl.BlockSpec((pl.Squeezed(), nhead, tq, Dh), lambda n, t: (n, 0, t, 0))
                for _ in range(3)),
        ),
        compiler_params=pltpu.CompilerParams(
            dimension_semantics=("parallel", "parallel"),
            vmem_limit_bytes=vmem_limit),
    )
    q, k, v = qkv_call(xc, wqkv, cos_cat, sin_sgn)

    # ---- call 2: banded flash attention + out_proj + norms + GatedMlp ------
    kv_map = lambda n, i, j: (n, 0, jnp.clip(i - left + j, 0, t_blocks - 1), 0)
    const = lambda n, i, j: (0, 0)

    itm = cdt.itemsize
    flops = (4 * N * (T // tq) * kb_count * nhead * tq * tk * Dh
             + 2 * N * T * D * D + 6 * N * T * D * Hff)
    transcend = N * (T // tq) * kb_count * nhead * tq * tk + N * T * Hff
    bytes_acc = (N * T * D * 4 + 3 * N * nhead * T * Dh * itm * kb_count
                 + (D * D + 3 * D * Hff) * itm + N * T * D * 4)

    attn_call = pl.pallas_call(
        partial(attn_mlp_kernel, nhead=nhead, head_dim=Dh, window=(w0, w1),
                alpha=float(deepnorm_alpha), eps=float(eps), hff=Hff,
                tq=tq, tk=tk, t_blocks=t_blocks, left_blocks=left,
                approx_recip=bool(cdt == jnp.dtype(jnp.bfloat16))),
        out_shape=jax.ShapeDtypeStruct((N, T, D), jnp.float32),
        grid_spec=pltpu.PrefetchScalarGridSpec(
            num_scalar_prefetch=0,
            grid=(N, T // tq, kb_count),
            in_specs=[
                pl.BlockSpec((pl.Squeezed(), tq, D), lambda n, i, j: (n, i, 0)),          # x (residual)
                pl.BlockSpec((pl.Squeezed(), nhead, tq, Dh), lambda n, i, j: (n, 0, i, 0)),  # q
                pl.BlockSpec((pl.Squeezed(), nhead, tk, Dh), kv_map),                        # k (band)
                pl.BlockSpec((pl.Squeezed(), nhead, tk, Dh), kv_map),                        # v (band)
                pl.BlockSpec((D, D), const),          # out_proj^T
                pl.BlockSpec((1, D), const),          # out_proj bias
                pl.BlockSpec((1, D), const),          # norm1 weight
                pl.BlockSpec((D, 2 * Hff), const),    # fc1^T
                pl.BlockSpec((Hff, D), const),        # fc2^T
                pl.BlockSpec((1, D), const),          # norm2 weight
            ],
            out_specs=pl.BlockSpec((pl.Squeezed(), tq, D), lambda n, i, j: (n, i, 0)),
            scratch_shapes=[pltpu.VMEM((nhead, tq, 1), jnp.float32),   # m
                            pltpu.VMEM((nhead, tq, 1), jnp.float32),   # l
                            pltpu.VMEM((nhead, tq, Dh), jnp.float32)], # acc
        ),
        compiler_params=pltpu.CompilerParams(
            dimension_semantics=("parallel", "parallel", "arbitrary"),
            vmem_limit_bytes=vmem_limit),
        cost_estimate=pl.CostEstimate(flops=int(flops), transcendentals=int(transcend),
                                      bytes_accessed=int(bytes_acc)),
    )
    return attn_call(x, q, k, v, wout, bout, g1, wfc1, wfc2, g2)


# ---------------------------------------------------------------------------
# Pure-JAX reference (dense masked attention) for validation.
# ---------------------------------------------------------------------------
def reference(x, params, *, nhead, attn_window, deepnorm_alpha, eps=1e-5):
    N, T, D = x.shape
    Dh = D // nhead
    cos, sin = params["cos"], params["sin"]

    def rope(t):  # (N, T, H, Dh)
        t1, t2 = t[..., : Dh // 2], t[..., Dh // 2:]
        c = cos[None, :, None, :]
        s = sin[None, :, None, :]
        return jnp.concatenate([t1 * c - t2 * s, t1 * s + t2 * c], axis=-1)

    qkv = (x @ params["wqkv_t"]).reshape(N, T, 3, nhead, Dh)
    q, k, v = rope(qkv[:, :, 0]), rope(qkv[:, :, 1]), qkv[:, :, 2]
    q, k, v = (t.transpose(0, 2, 1, 3) for t in (q, k, v))
    s = jnp.einsum("nhtd,nhsd->nhts", q, k) / math.sqrt(Dh)
    ii = jnp.arange(T)[:, None]
    jj = jnp.arange(T)[None, :]
    allowed = (jj - ii >= -attn_window[0]) & (jj - ii <= attn_window[1])
    s = jnp.where(allowed, s, -1e30)
    p = jax.nn.softmax(s, axis=-1)
    o = jnp.einsum("nhts,nhsd->nhtd", p, v).transpose(0, 2, 1, 3).reshape(N, T, D)
    attn = o @ params["wout_t"] + params["bout"][0]
    h1 = attn + deepnorm_alpha * x
    y1 = h1 * lax.rsqrt(jnp.mean(h1 * h1, -1, keepdims=True) + eps) * params["g1"][0]
    ff = y1 @ params["wfc1_t"]
    Hff = params["wfc2_t"].shape[0]
    a, g = ff[..., :Hff], ff[..., Hff:]
    ffo = (a * (g * jax.nn.sigmoid(g))) @ params["wfc2_t"]
    h2 = ffo + deepnorm_alpha * y1
    return h2 * lax.rsqrt(jnp.mean(h2 * h2, -1, keepdims=True) + eps) * params["g2"][0]


if __name__ == "__main__":
    # Small shapes consistent with the module (exercise 2 q-tiles, band clamping, roll RoPE).
    N, T = 2, 256
    d_model, nhead, dim_ff = 256, 2, 512
    Dh = d_model // nhead                    # 128
    deepnorm_alpha = 1.8607
    deepnorm_beta = 0.3081                   # only affects init scale
    attn_window = (63, 64)

    key = jax.random.PRNGKey(0)
    ks = jax.random.split(key, 8)

    def xavier(k, shape, gain):
        fan_in, fan_out = shape[0], shape[1]
        std = gain * math.sqrt(2.0 / (fan_in + fan_out))
        return std * jax.random.normal(k, shape, dtype=jnp.float32)

    # Wqkv (no bias): q,k columns gain=1, v columns gain=deepnorm_beta (stored transposed)
    wq = xavier(ks[0], (d_model, 2 * d_model), 1.0)
    wv = xavier(ks[1], (d_model, d_model), deepnorm_beta)
    wqkv_t = jnp.concatenate([wq, wv], axis=1)                      # (D, 3D)
    wout_t = xavier(ks[2], (d_model, d_model), deepnorm_beta)       # (D, D)
    bout = 0.02 * jax.random.normal(ks[3], (1, d_model), dtype=jnp.float32)
    wfc1_t = xavier(ks[4], (d_model, 2 * dim_ff), deepnorm_beta)    # (D, 2H)
    wfc2_t = xavier(ks[5], (dim_ff, d_model), deepnorm_beta)        # (H, D)
    g1 = jnp.ones((1, d_model), dtype=jnp.float32)
    g2 = jnp.ones((1, d_model), dtype=jnp.float32)

    # Rotary tables (rotary_dim == head_dim, base 10000, non-interleaved)
    inv_freq = 1.0 / (10000.0 ** (jnp.arange(0, Dh, 2, dtype=jnp.float32) / Dh))
    freqs = jnp.arange(T, dtype=jnp.float32)[:, None] * inv_freq[None, :]   # (T, Dh//2)
    params = dict(wqkv_t=wqkv_t, wout_t=wout_t, bout=bout,
                  cos=jnp.cos(freqs), sin=jnp.sin(freqs),
                  g1=g1, wfc1_t=wfc1_t, wfc2_t=wfc2_t, g2=g2)

    x = jax.random.normal(ks[6], (N, T, d_model), dtype=jnp.float32)

    ref = reference(x, params, nhead=nhead, attn_window=attn_window,
                    deepnorm_alpha=deepnorm_alpha)

    # f32 matmul path: validates the banded-flash / tiling logic with tight tolerance
    out_f32 = transformer_encoder_layer(x, params, nhead=nhead, attn_window=attn_window,
                                        deepnorm_alpha=deepnorm_alpha,
                                        compute_dtype=jnp.float32)
    out_f32 = jax.block_until_ready(out_f32)
    assert out_f32.shape == (N, T, d_model)
    assert jnp.allclose(out_f32, ref, atol=2e-3, rtol=2e-3), "f32 kernel mismatch vs reference"

    # bf16 MXU path (default on v6e/v7x): looser tolerance for bf16 input rounding
    out_bf16 = transformer_encoder_layer(x, params, nhead=nhead, attn_window=attn_window,
                                         deepnorm_alpha=deepnorm_alpha,
                                         compute_dtype=jnp.bfloat16)
    out_bf16 = jax.block_until_ready(out_bf16)
    assert jnp.allclose(out_bf16, ref, atol=1e-1, rtol=1e-1), "bf16 kernel mismatch vs reference"

    print("KERNEL_OK")
</pallas_src>

<mosaic_0001>
module attributes {stable_mosaic.version = 11 : i64} {
  func.func @qkv_rope_kernel(%arg0: i32, %arg1: i32, %arg2: memref<1x128x256xf32, #tpu.memory_space<vmem>>, %arg3: memref<256x768xf32, #tpu.memory_space<vmem>>, %arg4: memref<128x128xf32, #tpu.memory_space<vmem>>, %arg5: memref<128x128xf32, #tpu.memory_space<vmem>>, %arg6: memref<1x2x128x128xf32, #tpu.memory_space<vmem>>, %arg7: memref<1x2x128x128xf32, #tpu.memory_space<vmem>>, %arg8: memref<1x2x128x128xf32, #tpu.memory_space<vmem>>) attributes {dimension_semantics = [#tpu.dimension_semantics<parallel>, #tpu.dimension_semantics<parallel>], iteration_bounds = array<i64: 2, 2>, scalar_prefetch = 0 : i64, scratch_operands = 0 : i64, tpu.core_type = #tpu.core_type<tc>, window_params = [{transform_indices = @transform_0, window_bounds = array<i64: 1, 128, 256>}, {pipeline_mode = #tpu.pipeline_mode<synchronous>, transform_indices = @transform_1, window_bounds = array<i64: 256, 768>}, {transform_indices = @transform_2, window_bounds = array<i64: 128, 128>}, {transform_indices = @transform_3, window_bounds = array<i64: 128, 128>}, {transform_indices = @transform_4, window_bounds = array<i64: 1, 2, 128, 128>}, {transform_indices = @transform_5, window_bounds = array<i64: 1, 2, 128, 128>}, {transform_indices = @transform_6, window_bounds = array<i64: 1, 2, 128, 128>}]} {
    %c0 = arith.constant 0 : index
    %c0_0 = arith.constant 0 : index
    %c0_1 = arith.constant 0 : index
    %0 = vector.load %arg2[%c0, %c0_0, %c0_1] : memref<1x128x256xf32, #tpu.memory_space<vmem>>, vector<1x128x256xf32>
    %1 = vector.shape_cast %0 : vector<1x128x256xf32> to vector<128x256xf32>
    %c0_2 = arith.constant 0 : index
    %c0_3 = arith.constant 0 : index
    %2 = vector.load %arg3[%c0_2, %c0_3] : memref<256x768xf32, #tpu.memory_space<vmem>>, vector<256x768xf32>
    %cst = arith.constant dense<0.000000e+00> : vector<128x768xf32>
    %3 = tpu.matmul %1, %2, %cst {dimension_numbers = #tpu.dot_dimension_numbers<[1], [0], [0], [1], [0, 0, 1, 1], [], []>} : vector<128x256xf32>, vector<256x768xf32>, vector<128x768xf32> -> vector<128x768xf32>
    %c0_4 = arith.constant 0 : index
    %c0_5 = arith.constant 0 : index
    %4 = vector.load %arg4[%c0_4, %c0_5] : memref<128x128xf32, #tpu.memory_space<vmem>>, vector<128x128xf32>
    %c0_6 = arith.constant 0 : index
    %c0_7 = arith.constant 0 : index
    %5 = vector.load %arg5[%c0_6, %c0_7] : memref<128x128xf32, #tpu.memory_space<vmem>>, vector<128x128xf32>
    %6 = vector.extract_strided_slice %3 {offsets = [0, 0], sizes = [128, 128], strides = [1, 1]} : vector<128x768xf32> to vector<128x128xf32>
    %7 = arith.mulf %6, %4 : vector<128x128xf32>
    %c64_i32 = arith.constant 64 : i32
    %8 = tpu.dynamic_rotate %6 by %c64_i32 dim 1 : vector<128x128xf32>, i32 -> vector<128x128xf32>
    %9 = arith.mulf %8, %5 : vector<128x128xf32>
    %10 = arith.addf %7, %9 : vector<128x128xf32>
    %cst_8 = arith.constant 0.0883883461 : f32
    %11 = vector.broadcast %cst_8 : f32 to vector<128x128xf32>
    %12 = arith.mulf %10, %11 : vector<128x128xf32>
    %c0_9 = arith.constant 0 : index
    %c0_10 = arith.constant 0 : index
    %c0_11 = arith.constant 0 : index
    %c0_12 = arith.constant 0 : index
    %13 = vector.load %arg6[%c0_9, %c0_10, %c0_11, %c0_12] : memref<1x2x128x128xf32, #tpu.memory_space<vmem>>, vector<1x1x128x128xf32>
    %14 = vector.shape_cast %13 : vector<1x1x128x128xf32> to vector<128x128xf32>
    %15 = vector.shape_cast %12 : vector<128x128xf32> to vector<1x1x128x128xf32>
    tpu.vector_store %arg6[%c0_9, %c0_10, %c0_11, %c0_12], %15 {strides = array<i32>} : memref<1x2x128x128xf32, #tpu.memory_space<vmem>>, vector<1x1x128x128xf32>,
    %16 = vector.extract_strided_slice %3 {offsets = [0, 256], sizes = [128, 128], strides = [1, 1]} : vector<128x768xf32> to vector<128x128xf32>
    %17 = arith.mulf %16, %4 : vector<128x128xf32>
    %c64_i32_13 = arith.constant 64 : i32
    %18 = tpu.dynamic_rotate %16 by %c64_i32_13 dim 1 : vector<128x128xf32>, i32 -> vector<128x128xf32>
    %19 = arith.mulf %18, %5 : vector<128x128xf32>
    %20 = arith.addf %17, %19 : vector<128x128xf32>
    %c0_14 = arith.constant 0 : index
    %c0_15 = arith.constant 0 : index
    %c0_16 = arith.constant 0 : index
    %c0_17 = arith.constant 0 : index
    %21 = vector.load %arg7[%c0_14, %c0_15, %c0_16, %c0_17] : memref<1x2x128x128xf32, #tpu.memory_space<vmem>>, vector<1x1x128x128xf32>
    %22 = vector.shape_cast %21 : vector<1x1x128x128xf32> to vector<128x128xf32>
    %23 = vector.shape_cast %20 : vector<128x128xf32> to vector<1x1x128x128xf32>
    tpu.vector_store %arg7[%c0_14, %c0_15, %c0_16, %c0_17], %23 {strides = array<i32>} : memref<1x2x128x128xf32, #tpu.memory_space<vmem>>, vector<1x1x128x128xf32>,
    %24 = vector.extract_strided_slice %3 {offsets = [0, 512], sizes = [128, 128], strides = [1, 1]} : vector<128x768xf32> to vector<128x128xf32>
    %c0_18 = arith.constant 0 : index
    %c0_19 = arith.constant 0 : index
    %c0_20 = arith.constant 0 : index
    %c0_21 = arith.constant 0 : index
    %25 = vector.load %arg8[%c0_18, %c0_19, %c0_20, %c0_21] : memref<1x2x128x128xf32, #tpu.memory_space<vmem>>, vector<1x1x128x128xf32>
    %26 = vector.shape_cast %25 : vector<1x1x128x128xf32> to vector<128x128xf32>
    %27 = vector.shape_cast %24 : vector<128x128xf32> to vector<1x1x128x128xf32>
    tpu.vector_store %arg8[%c0_18, %c0_19, %c0_20, %c0_21], %27 {strides = array<i32>} : memref<1x2x128x128xf32, #tpu.memory_space<vmem>>, vector<1x1x128x128xf32>,
    %28 = vector.extract_strided_slice %3 {offsets = [0, 128], sizes = [128, 128], strides = [1, 1]} : vector<128x768xf32> to vector<128x128xf32>
    %29 = arith.mulf %28, %4 : vector<128x128xf32>
    %c64_i32_22 = arith.constant 64 : i32
    %30 = tpu.dynamic_rotate %28 by %c64_i32_22 dim 1 : vector<128x128xf32>, i32 -> vector<128x128xf32>
    %31 = arith.mulf %30, %5 : vector<128x128xf32>
    %32 = arith.addf %29, %31 : vector<128x128xf32>
    %cst_23 = arith.constant 0.0883883461 : f32
    %33 = vector.broadcast %cst_23 : f32 to vector<128x128xf32>
    %34 = arith.mulf %32, %33 : vector<128x128xf32>
    %c0_24 = arith.constant 0 : index
    %c1 = arith.constant 1 : index
    %c0_25 = arith.constant 0 : index
    %c0_26 = arith.constant 0 : index
    %35 = vector.load %arg6[%c0_24, %c1, %c0_25, %c0_26] : memref<1x2x128x128xf32, #tpu.memory_space<vmem>>, vector<1x1x128x128xf32>
    %36 = vector.shape_cast %35 : vector<1x1x128x128xf32> to vector<128x128xf32>
    %37 = vector.shape_cast %34 : vector<128x128xf32> to vector<1x1x128x128xf32>
    tpu.vector_store %arg6[%c0_24, %c1, %c0_25, %c0_26], %37 {strides = array<i32>} : memref<1x2x128x128xf32, #tpu.memory_space<vmem>>, vector<1x1x128x128xf32>,
    %38 = vector.extract_strided_slice %3 {offsets = [0, 384], sizes = [128, 128], strides = [1, 1]} : vector<128x768xf32> to vector<128x128xf32>
    %39 = arith.mulf %38, %4 : vector<128x128xf32>
    %c64_i32_27 = arith.constant 64 : i32
    %40 = tpu.dynamic_rotate %38 by %c64_i32_27 dim 1 : vector<128x128xf32>, i32 -> vector<128x128xf32>
    %41 = arith.mulf %40, %5 : vector<128x128xf32>
    %42 = arith.addf %39, %41 : vector<128x128xf32>
    %c0_28 = arith.constant 0 : index
    %c1_29 = arith.constant 1 : index
    %c0_30 = arith.constant 0 : index
    %c0_31 = arith.constant 0 : index
    %43 = vector.load %arg7[%c0_28, %c1_29, %c0_30, %c0_31] : memref<1x2x128x128xf32, #tpu.memory_space<vmem>>, vector<1x1x128x128xf32>
    %44 = vector.shape_cast %43 : vector<1x1x128x128xf32> to vector<128x128xf32>
    %45 = vector.shape_cast %42 : vector<128x128xf32> to vector<1x1x128x128xf32>
    tpu.vector_store %arg7[%c0_28, %c1_29, %c0_30, %c0_31], %45 {strides = array<i32>} : memref<1x2x128x128xf32, #tpu.memory_space<vmem>>, vector<1x1x128x128xf32>,
    %46 = vector.extract_strided_slice %3 {offsets = [0, 640], sizes = [128, 128], strides = [1, 1]} : vector<128x768xf32> to vector<128x128xf32>
    %c0_32 = arith.constant 0 : index
    %c1_33 = arith.constant 1 : index
    %c0_34 = arith.constant 0 : index
    %c0_35 = arith.constant 0 : index
    %47 = vector.load %arg8[%c0_32, %c1_33, %c0_34, %c0_35] : memref<1x2x128x128xf32, #tpu.memory_space<vmem>>, vector<1x1x128x128xf32>
    %48 = vector.shape_cast %47 : vector<1x1x128x128xf32> to vector<128x128xf32>
    %49 = vector.shape_cast %46 : vector<128x128xf32> to vector<1x1x128x128xf32>
    tpu.vector_store %arg8[%c0_32, %c1_33, %c0_34, %c0_35], %49 {strides = array<i32>} : memref<1x2x128x128xf32, #tpu.memory_space<vmem>>, vector<1x1x128x128xf32>,
    return
  }
  func.func @transform_0(%arg0: i32, %arg1: i32) -> (i32, i32, i32) {
    %c0_i32 = arith.constant 0 : i32
    %c0_i32_0 = arith.constant 0 : i32
    return %arg0, %arg1, %c0_i32 : i32, i32, i32
  }
  func.func @transform_1(%arg0: i32, %arg1: i32) -> (i32, i32) {
    %c0_i32 = arith.constant 0 : i32
    %c0_i32_0 = arith.constant 0 : i32
    %c0_i32_1 = arith.constant 0 : i32
    return %c0_i32, %c0_i32_0 : i32, i32
  }
  func.func @transform_2(%arg0: i32, %arg1: i32) -> (i32, i32) {
    %c0_i32 = arith.constant 0 : i32
    %c0_i32_0 = arith.constant 0 : i32
    return %arg1, %c0_i32 : i32, i32
  }
  func.func @transform_3(%arg0: i32, %arg1: i32) -> (i32, i32) {
    %c0_i32 = arith.constant 0 : i32
    %c0_i32_0 = arith.constant 0 : i32
    return %arg1, %c0_i32 : i32, i32
  }
  func.func @transform_4(%arg0: i32, %arg1: i32) -> (i32, i32, i32, i32) {
    %c0_i32 = arith.constant 0 : i32
    %c0_i32_0 = arith.constant 0 : i32
    %c0_i32_1 = arith.constant 0 : i32
    return %arg0, %c0_i32, %arg1, %c0_i32_0 : i32, i32, i32, i32
  }
  func.func @transform_5(%arg0: i32, %arg1: i32) -> (i32, i32, i32, i32) {
    %c0_i32 = arith.constant 0 : i32
    %c0_i32_0 = arith.constant 0 : i32
    %c0_i32_1 = arith.constant 0 : i32
    return %arg0, %c0_i32, %arg1, %c0_i32_0 : i32, i32, i32, i32
  }
  func.func @transform_6(%arg0: i32, %arg1: i32) -> (i32, i32, i32, i32) {
    %c0_i32 = arith.constant 0 : i32
    %c0_i32_0 = arith.constant 0 : i32
    %c0_i32_1 = arith.constant 0 : i32
    return %arg0, %c0_i32, %arg1, %c0_i32_0 : i32, i32, i32, i32
  }
}

</mosaic_0001>

<llo_original>
// kernel: tpu_custom_call.1
$region0: #{tpu_custom_call.1}
  #allocation0 [shape = 'u32[]', space=smem, size = 0x4, offset = 0x4, fixed_abs, tag = 'smem constant byte address 0x4 - core index']
  #allocation1 [shape = 'u32[144,128]{1,0:T(1,128)}', space=vmem, size = 0x12000, scoped, tag = 'internal scratch']
  #allocation13 [shape = 's32[]', space=sflag, size = 0x4, offset = 0, fixed_abs, tag = 'sflag constant byte address 0x0 - dummy sync flag']
  #allocation15 [shape = 's32[]', space=sflag, size = 0x4, offset = 0, fixed_abs, tag = 'sflag constant byte address 0x0 - dummy sync flag']
  #allocation17 [shape = 's32[]', space=sflag, size = 0x4, offset = 0, fixed_abs, tag = 'sflag constant byte address 0x0 - dummy sync flag']
  %s0 = inlined_call_operand.hbm [shape: f32[2,256,256], index: 0, kind: input, shape index: {}]
  %s1 = inlined_call_operand.hbm [shape: f32[256,768], index: 1, kind: input, shape index: {}]
  %s2 = inlined_call_operand.hbm [shape: f32[256,128], index: 2, kind: input, shape index: {}]
  %s3 = inlined_call_operand.hbm [shape: f32[256,128], index: 3, kind: input, shape index: {}]
  %s4 = inlined_call_operand.hbm [shape: f32[2,2,256,128], index: 4, kind: output, shape index: {0}]
  %s5 = inlined_call_operand.hbm [shape: f32[2,2,256,128], index: 5, kind: output, shape index: {1}]
  %s6 = inlined_call_operand.hbm [shape: f32[2,2,256,128], index: 6, kind: output, shape index: {2}]
  %7 = xla_tuple %s4, %s5, %s6
  %s8 = sld [smem:[#allocation0]]
  $region81: #{tpu_custom_call.1} parent=0
    _
  %s10 = ssub.s32 1, %s8
  %s11 = scalar_select 0, %s10, %s8
  $region1: #{tpu_custom_call.1} parent=0
    #allocation2 [shape = 'u8[262144]{0}', space=vmem, size = 0x40000, scoped, tag = 'input window, operand 0']
    #allocation3 [shape = 's32[2]{0}', space=sflag, size = 0x8, scoped, tag = 'scoped memory for tpu_custom_call.1']
    #allocation4 [shape = 's32[2]{0}', space=sflag, size = 0x8, scoped, tag = 'scoped memory for tpu_custom_call.1']
    #allocation5 [shape = 'u8[786432]{0}', space=vmem, size = 0xc0000, scoped, tag = 'input window, operand 1, single buffered']
    #allocation6 [shape = 's32[1]{0}', space=sflag, size = 0x4, scoped, tag = 'scoped memory for tpu_custom_call.1']
    #allocation7 [shape = 'u8[131072]{0}', space=vmem, size = 0x20000, scoped, tag = 'input window, operand 2']
    #allocation8 [shape = 'u8[131072]{0}', space=vmem, size = 0x20000, scoped, tag = 'input window, operand 3']
    #allocation9 [shape = 'u8[262144]{0}', space=vmem, size = 0x40000, scoped, tag = 'output window, operand 0']
    #allocation10 [shape = 'u8[262144]{0}', space=vmem, size = 0x40000, scoped, tag = 'output window, operand 1']
    #allocation11 [shape = 's32[2]{0}', space=sflag, size = 0x8, scoped, tag = 'scoped memory for tpu_custom_call.1']
    #allocation12 [shape = 'u8[262144]{0}', space=vmem, size = 0x40000, scoped, tag = 'output window, operand 2']
    %12 = vsyncpa [#allocation3], 0
    %s13 = scalar_lea.sflag [#allocation3], 1
    %14 = vsyncpa %s13, 0
    %15 = vsyncpa [#allocation6], 0
    %16 = vsyncpa [#allocation4], 0
    %s17 = scalar_lea.sflag [#allocation4], 1
    %18 = vsyncpa %s17, 0
    %19 = vsyncpa [#allocation11], 0
    %s20 = scalar_lea.sflag [#allocation11], 1
    %21 = vsyncpa %s20, 0
    loop: start=0, step=1, limit=6
    $region2: #{tpu_custom_call.1} parent=1 // loop_pre_header
      _
    $region3: #{tpu_custom_call.1} parent=1 // loop_header
      %s23 = sphi 0, %s27
      %p24 = scmp.ge.s32.totalorder %s23, 6
      %s30 = sphi 0, %s42
      %s31 = sphi 0, %s38
      %s32 = sphi 0, %s30
      %s33 = sphi 0, %s31
      %s34 = sphi 0, %s32
      %s35 = sphi 0, %s33
      %s47 = sphi 0, %s49
      %s50 = sphi 0, %s47
      %s51 = sphi 0, %s50
      %s67 = sphi 0, %s51
      %s71 = sphi 0, %s71
      %s73 = sphi 0, %s71
      %s74 = sphi 0, %s73
      %s88 = sphi 0, %s74
      %s94 = sphi 0, %s96
      %s97 = sphi 0, %s94
      %s98 = sphi 0, %s97
      %s114 = sphi 0, %s98
      %s120 = sphi 0, %s122
      %s123 = sphi 0, %s120
      %s124 = sphi 0, %s123
      %s140 = sphi 0, %s124
      %s148 = sphi 0, %s150
      %s151 = sphi 0, %s148
      %s152 = sphi 0, %s151
      %s168 = sphi 0, %s152
      %s176 = sphi 0, %s178
      %s179 = sphi 0, %s176
      %s180 = sphi 0, %s179
      %s196 = sphi 0, %s180
      %s204 = sphi 0, %s206
      %s207 = sphi 0, %s204
      %s208 = sphi 0, %s207
      %s224 = sphi 0, %s208
    $region4: #{tpu_custom_call.1} parent=1 // loop_header_branch
      %26 = sbr.rel (%p24) target = $region8
    $region5: #{tpu_custom_call.1} parent=1 // loop_body
      %s28 = ssub.s32 %s23, 1
      %s29 = ssub.s32 %s23, 2
      %s36 = sadd.s32 1, %s31
      %p37 = scmp.ge.s32.totalorder %s36, 2
      %s38 = scalar_select %p37, 0, %s36
      %s39 = sadd.s32 1, %s30
      %s40 = scalar_select %p37, %s39, %s30
      %p41 = scmp.ge.s32.totalorder %s40, 2
      %s42 = scalar_select %p41, 0, %s40
      %s43 = ssub.s32 %s30, %s42
      %s44 = ssub.s32 %s31, %s38
      %s45 = sor.u32 %s43, %s44
      %p46 = scmp.eq.s32.totalorder %s45, 0
      %s48 = sadd.s32 %s47, 1
      %s49 = scalar_select %p46, %s47, %s48
      %p52 = pneg %p46
      %p53 = scmp.eq.s32.totalorder %s23, 3
      %p54 = por %p52, %p53
      %p55 = scmp.ne.s32.totalorder %s47, %s50
      %p56 = scmp.eq.s32.totalorder %s23, 0
      %p57 = por %p55, %p56
      %p58 = scmp.ne.s32.totalorder %s47, %s50
      %p59 = scmp.eq.s32.totalorder %s28, 3
      %p60 = por %p58, %p59
      %p61 = scmp.ne.s32.totalorder %s50, %s51
      %p62 = scmp.eq.s32.totalorder %s28, 0
      %p63 = por %p61, %p62
      %p64 = scmp.ne.s32.totalorder %s50, %s51
      %p65 = scmp.eq.s32.totalorder %s29, 3
      %p66 = por %p64, %p65
      %p68 = scmp.ne.s32.totalorder %s51, %s67
      %p69 = scmp.eq.s32.totalorder %s29, 0
      %p70 = por %p68, %p69
      %s72 = sadd.s32 %s71, 1
      %p75 = scmp.eq.s32.totalorder %s23, 3
      %p76 = scmp.ne.s32.totalorder %s71, %s73
      %p77 = scmp.eq.s32.totalorder %s23, 0
      %p78 = por %p76, %p77
      %p79 = scmp.ne.s32.totalorder %s71, %s73
      %p80 = scmp.eq.s32.totalorder %s28, 3
      %p81 = por %p79, %p80
      %p82 = scmp.ne.s32.totalorder %s73, %s74
      %p83 = scmp.eq.s32.totalorder %s28, 0
      %p84 = por %p82, %p83
      %p85 = scmp.ne.s32.totalorder %s73, %s74
      %p86 = scmp.eq.s32.totalorder %s29, 3
      %p87 = por %p85, %p86
      %p89 = scmp.ne.s32.totalorder %s74, %s88
      %p90 = scmp.eq.s32.totalorder %s29, 0
      %p91 = por %p89, %p90
      %s92 = ssub.s32 %s31, %s38
      %p93 = scmp.eq.s32.totalorder %s92, 0
      %s95 = sadd.s32 %s94, 1
      %s96 = scalar_select %p93, %s94, %s95
      %p99 = pneg %p93
      %p100 = scmp.eq.s32.totalorder %s23, 3
      %p101 = por %p99, %p100
      %p102 = scmp.ne.s32.totalorder %s94, %s97
      %p103 = scmp.eq.s32.totalorder %s23, 0
      %p104 = por %p102, %p103
      %p105 = scmp.ne.s32.totalorder %s94, %s97
      %p106 = scmp.eq.s32.totalorder %s28, 3
      %p107 = por %p105, %p106
      %p108 = scmp.ne.s32.totalorder %s97, %s98
      %p109 = scmp.eq.s32.totalorder %s28, 0
      %p110 = por %p108, %p109
      %p111 = scmp.ne.s32.totalorder %s97, %s98
      %p112 = scmp.eq.s32.totalorder %s29, 3
      %p113 = por %p111, %p112
      %p115 = scmp.ne.s32.totalorder %s98, %s114
      %p116 = scmp.eq.s32.totalorder %s29, 0
      %p117 = por %p115, %p116
      %s118 = ssub.s32 %s31, %s38
      %p119 = scmp.eq.s32.totalorder %s118, 0
      %s121 = sadd.s32 %s120, 1
      %s122 = scalar_select %p119, %s120, %s121
      %p125 = pneg %p119
      %p126 = scmp.eq.s32.totalorder %s23, 3
      %p127 = por %p125, %p126
      %p128 = scmp.ne.s32.totalorder %s120, %s123
      %p129 = scmp.eq.s32.totalorder %s23, 0
      %p130 = por %p128, %p129
      %p131 = scmp.ne.s32.totalorder %s120, %s123
      %p132 = scmp.eq.s32.totalorder %s28, 3
      %p133 = por %p131, %p132
      %p134 = scmp.ne.s32.totalorder %s123, %s124
      %p135 = scmp.eq.s32.totalorder %s28, 0
      %p136 = por %p134, %p135
      %p137 = scmp.ne.s32.totalorder %s123, %s124
      %p138 = scmp.eq.s32.totalorder %s29, 3
      %p139 = por %p137, %p138
      %p141 = scmp.ne.s32.totalorder %s124, %s140
      %p142 = scmp.eq.s32.totalorder %s29, 0
      %p143 = por %p141, %p142
      %s144 = ssub.s32 %s30, %s42
      %s145 = ssub.s32 %s31, %s38
      %s146 = sor.u32 %s144, %s145
      %p147 = scmp.eq.s32.totalorder %s146, 0
      %s149 = sadd.s32 %s148, 1
      %s150 = scalar_select %p147, %s148, %s149
      %p153 = pneg %p147
      %p154 = scmp.eq.s32.totalorder %s23, 3
      %p155 = por %p153, %p154
      %p156 = scmp.ne.s32.totalorder %s148, %s151
      %p157 = scmp.eq.s32.totalorder %s23, 0
      %p158 = por %p156, %p157
      %p159 = scmp.ne.s32.totalorder %s148, %s151
      %p160 = scmp.eq.s32.totalorder %s28, 3
      %p161 = por %p159, %p160
      %p162 = scmp.ne.s32.totalorder %s151, %s152
      %p163 = scmp.eq.s32.totalorder %s28, 0
      %p164 = por %p162, %p163
      %p165 = scmp.ne.s32.totalorder %s151, %s152
      %p166 = scmp.eq.s32.totalorder %s29, 3
      %p167 = por %p165, %p166
      %p169 = scmp.ne.s32.totalorder %s152, %s168
      %p170 = scmp.eq.s32.totalorder %s29, 0
      %p171 = por %p169, %p170
      %s172 = ssub.s32 %s30, %s42
      %s173 = ssub.s32 %s31, %s38
      %s174 = sor.u32 %s172, %s173
      %p175 = scmp.eq.s32.totalorder %s174, 0
      %s177 = sadd.s32 %s176, 1
      %s178 = scalar_select %p175, %s176, %s177
      %p181 = pneg %p175
      %p182 = scmp.eq.s32.totalorder %s23, 3
      %p183 = por %p181, %p182
      %p184 = scmp.ne.s32.totalorder %s176, %s179
      %p185 = scmp.eq.s32.totalorder %s23, 0
      %p186 = por %p184, %p185
      %p187 = scmp.ne.s32.totalorder %s176, %s179
      %p188 = scmp.eq.s32.totalorder %s28, 3
      %p189 = por %p187, %p188
      %p190 = scmp.ne.s32.totalorder %s179, %s180
      %p191 = scmp.eq.s32.totalorder %s28, 0
      %p192 = por %p190, %p191
      %p193 = scmp.ne.s32.totalorder %s179, %s180
      %p194 = scmp.eq.s32.totalorder %s29, 3
      %p195 = por %p193, %p194
      %p197 = scmp.ne.s32.totalorder %s180, %s196
      %p198 = scmp.eq.s32.totalorder %s29, 0
      %p199 = por %p197, %p198
      %s200 = ssub.s32 %s30, %s42
      %s201 = ssub.s32 %s31, %s38
      %s202 = sor.u32 %s200, %s201
      %p203 = scmp.eq.s32.totalorder %s202, 0
      %s205 = sadd.s32 %s204, 1
      %s206 = scalar_select %p203, %s204, %s205
      %p209 = pneg %p203
      %p210 = scmp.eq.s32.totalorder %s23, 3
      %p211 = por %p209, %p210
      %p212 = scmp.ne.s32.totalorder %s204, %s207
      %p213 = scmp.eq.s32.totalorder %s23, 0
      %p214 = por %p212, %p213
      %p215 = scmp.ne.s32.totalorder %s204, %s207
      %p216 = scmp.eq.s32.totalorder %s28, 3
      %p217 = por %p215, %p216
      %p218 = scmp.ne.s32.totalorder %s207, %s208
      %p219 = scmp.eq.s32.totalorder %s28, 0
      %p220 = por %p218, %p219
      %p221 = scmp.ne.s32.totalorder %s207, %s208
      %p222 = scmp.eq.s32.totalorder %s29, 3
      %p223 = por %p221, %p222
      %p225 = scmp.ne.s32.totalorder %s208, %s224
      %p226 = scmp.eq.s32.totalorder %s29, 0
      %p227 = por %p225, %p226
      %p228 = scmp.le.s32.totalorder 1, %s23
      %p229 = scmp.lt.s32.totalorder %s23, 5
      %p230 = pnand %p228, %p229
      %p231 = pneg %p230
      // Predicated region
      $region9: #{tpu_custom_call.1} parent=5 // pred_check
        _
      $region10: #{tpu_custom_call.1} parent=5 // pred_check_branch
        %233 = sbr.rel (%p230) target = $region12
      $region11: #{tpu_custom_call.1} parent=5 // pred_region
        %s234 = ssub.s32 %s23, 1
        // Predicated region
        $region13: #{tpu_custom_call.1} parent=11 // pred_check
          %p235 = pneg %p84
        $region14: #{tpu_custom_call.1} parent=11 // pred_check_branch
          %237 = sbr.rel (%p235) target = $region16
        $region15: #{tpu_custom_call.1} parent=11 // pred_region
          %s239 = ssub.s32 24576, 24576
          %240 = vsyncadd [#allocation6], %s239
          %s241 = sshll.u32 [#allocation5], 4
          %s242 = int_to_ptr.vmem [resolvable:$true] %s241
          %247 = dma.hbm_to_vmem [thread:$0]  %s1, 24576, %s242, [#allocation6], 768, 768, 48
        $region16: #{tpu_custom_call.1} parent=11 // pred_fallthru
          _
      $region12: #{tpu_custom_call.1} parent=5 // pred_fallthru
        _
      %p248 = scmp.lt.s32.totalorder %s23, 4
      // Predicated region
      $region17: #{tpu_custom_call.1} parent=5 // pred_check
        %p249 = pneg %p248
      $region18: #{tpu_custom_call.1} parent=5 // pred_check_branch
        %251 = sbr.rel (%p249) target = $region20
      $region19: #{tpu_custom_call.1} parent=5 // pred_region
        // Predicated region
        $region21: #{tpu_custom_call.1} parent=19 // pred_check
          %p252 = pneg %p57
        $region22: #{tpu_custom_call.1} parent=19 // pred_check_branch
          %254 = sbr.rel (%p252) target = $region24
        $region23: #{tpu_custom_call.1} parent=19 // pred_region
          %s255 = sand.u32 %s23, 1
          %s256 = scalar_lea.sflag [#allocation3], %s255
          %s257 = sand.u32 %s47, 1
          %s258 = smul.addr %s257, 256
          %s259 = scalar_lea.vmem [#allocation2], %s258
          %s260 = smul.u32 16, %s31
          %s262 = ssub.s32 4096, 4096
          %263 = vsyncadd %s256, %s262
          %s264 = smul.addr %s260, 2
          %s265 = smul.addr %s30, 64
          %s266 = sadd.s32 %s264, %s265
          %s267 = smul.addr %s266, 128
          %s268 = scalar_lea.hbm %s0, %s267
          %s269 = sshll.u32 %s259, 4
          %s270 = int_to_ptr.vmem [resolvable:$true] %s269
          %275 = dma.hbm_to_vmem [thread:$0]  %s268, 4096, %s270, %s256, 256, 256, 16
        $region24: #{tpu_custom_call.1} parent=19 // pred_fallthru
          _
        // Predicated region
        $region25: #{tpu_custom_call.1} parent=19 // pred_check
          %p276 = pneg %p104
        $region26: #{tpu_custom_call.1} parent=19 // pred_check_branch
          %278 = sbr.rel (%p276) target = $region28
        $region27: #{tpu_custom_call.1} parent=19 // pred_region
          %s279 = sand.u32 %s23, 1
          %s280 = scalar_lea.sflag [#allocation3], %s279
          %s281 = sand.u32 %s94, 1
          %s282 = smul.addr %s281, 128
          %s283 = scalar_lea.vmem [#allocation7], %s282
          %s284 = smul.u32 16, %s31
          %s286 = ssub.s32 2048, 2048
          %287 = vsyncadd %s280, %s286
          %s288 = smul.addr %s284, 128
          %s289 = scalar_lea.hbm %s2, %s288
          %s290 = sshll.u32 %s283, 4
          %s291 = int_to_ptr.vmem [resolvable:$true] %s290
          %296 = dma.hbm_to_vmem [thread:$0]  %s289, 2048, %s291, %s280, 128, 128, 8
        $region28: #{tpu_custom_call.1} parent=19 // pred_fallthru
          _
        // Predicated region
        $region29: #{tpu_custom_call.1} parent=19 // pred_check
          %p297 = pneg %p130
        $region30: #{tpu_custom_call.1} parent=19 // pred_check_branch
          %299 = sbr.rel (%p297) target = $region32
        $region31: #{tpu_custom_call.1} parent=19 // pred_region
          %s300 = sand.u32 %s23, 1
          %s301 = scalar_lea.sflag [#allocation3], %s300
          %s302 = sand.u32 %s120, 1
          %s303 = smul.addr %s302, 128
          %s304 = scalar_lea.vmem [#allocation8], %s303
          %s305 = smul.u32 16, %s31
          %s307 = ssub.s32 2048, 2048
          %308 = vsyncadd %s301, %s307
          %s309 = smul.addr %s305, 128
          %s310 = scalar_lea.hbm %s3, %s309
          %s311 = sshll.u32 %s304, 4
          %s312 = int_to_ptr.vmem [resolvable:$true] %s311
          %317 = dma.hbm_to_vmem [thread:$0]  %s310, 2048, %s312, %s301, 128, 128, 8
        $region32: #{tpu_custom_call.1} parent=19 // pred_fallthru
          _
      $region20: #{tpu_custom_call.1} parent=5 // pred_fallthru
        _
      %p318 = scmp.le.s32.totalorder 1, %s23
      %p319 = scmp.lt.s32.totalorder %s23, 5
      %p320 = pnand %p318, %p319
      %p321 = pneg %p320
      // Predicated region
      $region33: #{tpu_custom_call.1} parent=5 // pred_check
        _
      $region34: #{tpu_custom_call.1} parent=5 // pred_check_branch
        %323 = sbr.rel (%p320) target = $region36
      $region35: #{tpu_custom_call.1} parent=5 // pred_region
        %s324 = ssub.s32 %s23, 1
        %s325 = sand.u32 %s28, 1
        %s326 = scalar_lea.sflag [#allocation3], %s325
        %s327 = sand.u32 %s50, 1
        %s328 = smul.addr %s327, 256
        %s329 = scalar_lea.vmem [#allocation2], %s328
        // Predicated region
        $region37: #{tpu_custom_call.1} parent=35 // pred_check
          %p330 = pneg %p63
        $region38: #{tpu_custom_call.1} parent=35 // pred_check_branch
          %332 = sbr.rel (%p330) target = $region40
        $region39: #{tpu_custom_call.1} parent=35 // pred_region
          %333 = dma.done %s326, 4096
        $region40: #{tpu_custom_call.1} parent=35 // pred_fallthru
          _
        // Predicated region
        $region41: #{tpu_custom_call.1} parent=35 // pred_check
          %p334 = pneg %p84
        $region42: #{tpu_custom_call.1} parent=35 // pred_check_branch
          %336 = sbr.rel (%p334) target = $region44
        $region43: #{tpu_custom_call.1} parent=35 // pred_region
          %337 = dma.done [#allocation6], 24576
        $region44: #{tpu_custom_call.1} parent=35 // pred_fallthru
          _
        %s338 = sand.u32 %s28, 1
        %s339 = scalar_lea.sflag [#allocation3], %s338
        %s340 = sand.u32 %s97, 1
        %s341 = smul.addr %s340, 128
        %s342 = scalar_lea.vmem [#allocation7], %s341
        // Predicated region
        $region45: #{tpu_custom_call.1} parent=35 // pred_check
          %p343 = pneg %p110
        $region46: #{tpu_custom_call.1} parent=35 // pred_check_branch
          %345 = sbr.rel (%p343) target = $region48
        $region47: #{tpu_custom_call.1} parent=35 // pred_region
          %346 = dma.done %s339, 2048
        $region48: #{tpu_custom_call.1} parent=35 // pred_fallthru
          _
        %s347 = sand.u32 %s28, 1
        %s348 = scalar_lea.sflag [#allocation3], %s347
        %s349 = sand.u32 %s123, 1
        %s350 = smul.addr %s349, 128
        %s351 = scalar_lea.vmem [#allocation8], %s350
        // Predicated region
        $region49: #{tpu_custom_call.1} parent=35 // pred_check
          %p352 = pneg %p136
        $region50: #{tpu_custom_call.1} parent=35 // pred_check_branch
          %354 = sbr.rel (%p352) target = $region52
        $region51: #{tpu_custom_call.1} parent=35 // pred_region
          %355 = dma.done %s348, 2048
        $region52: #{tpu_custom_call.1} parent=35 // pred_fallthru
          _
        %s356 = sand.u32 %s28, 1
        %s357 = scalar_lea.sflag [#allocation3], %s356
        %s358 = sand.u32 %s50, 1
        %s359 = smul.addr %s358, 256
        %s360 = scalar_lea.vmem [#allocation2], %s359
        %p361 = pneg %p63
        %p362 = pneg %p60
        %p363 = pneg %p84
        %p364 = pneg %p81
        %s365 = sand.u32 %s28, 1
        %s366 = scalar_lea.sflag [#allocation3], %s365
        %s367 = sand.u32 %s97, 1
        %s368 = smul.addr %s367, 128
        %s369 = scalar_lea.vmem [#allocation7], %s368
        %p370 = pneg %p110
        %p371 = pneg %p107
        %s372 = sand.u32 %s28, 1
        %s373 = scalar_lea.sflag [#allocation3], %s372
        %s374 = sand.u32 %s123, 1
        %s375 = smul.addr %s374, 128
        %s376 = scalar_lea.vmem [#allocation8], %s375
        %p377 = pneg %p136
        %p378 = pneg %p133
        %p379 = pneg %p164
        %p380 = pneg %p161
        %s381 = sand.u32 %s151, 1
        %s382 = scalar_lea.sflag [#allocation4], %s381
        %s383 = sand.u32 %s151, 1
        %s384 = smul.addr %s383, 256
        %s385 = scalar_lea.vmem [#allocation9], %s384
        %p386 = pneg %p192
        %p387 = pneg %p189
        %s388 = sand.u32 %s28, 1
        %s389 = scalar_lea.sflag [#allocation11], %s388
        %s390 = sand.u32 %s179, 1
        %s391 = smul.addr %s390, 256
        %s392 = scalar_lea.vmem [#allocation10], %s391
        %p393 = pneg %p220
        %p394 = pneg %p217
        %s395 = sand.u32 %s28, 1
        %s396 = scalar_lea.sflag [#allocation11], %s395
        %s397 = sand.u32 %s207, 1
        %s398 = smul.addr %s397, 256
        %s399 = scalar_lea.vmem [#allocation12], %s398
        %s400 = smul.u32 16, %s33
        %s401 = smul.u32 16, %s33
        %s402 = smul.u32 16, %s33
        %s403 = smul.u32 16, %s33
        %s404 = smul.u32 16, %s33
        %s405 = smul.u32 16, %s33
        %v406 = vld [vmem:[%s329] sm:$0xff]
        %v407 = vld [vmem:[%s329 + $0x8] sm:$0xff]
        %v408 = vld [vmem:[%s329 + $0x10] sm:$0xff]
        %v409 = vld [vmem:[%s329 + $0x18] sm:$0xff]
        %v410 = vld [vmem:[%s329 + $0x20] sm:$0xff]
        %v411 = vld [vmem:[%s329 + $0x28] sm:$0xff]
        %v412 = vld [vmem:[%s329 + $0x30] sm:$0xff]
        %v413 = vld [vmem:[%s329 + $0x38] sm:$0xff]
        %v414 = vld [vmem:[%s329 + $0x40] sm:$0xff]
        %v415 = vld [vmem:[%s329 + $0x48] sm:$0xff]
        %v416 = vld [vmem:[%s329 + $0x50] sm:$0xff]
        %v417 = vld [vmem:[%s329 + $0x58] sm:$0xff]
        %v418 = vld [vmem:[%s329 + $0x60] sm:$0xff]
        %v419 = vld [vmem:[%s329 + $0x68] sm:$0xff]
        %v420 = vld [vmem:[%s329 + $0x70] sm:$0xff]
        %v421 = vld [vmem:[%s329 + $0x78] sm:$0xff]
        %v422 = vld [vmem:[%s329 + $0x80] sm:$0xff]
        %v423 = vld [vmem:[%s329 + $0x88] sm:$0xff]
        %v424 = vld [vmem:[%s329 + $0x90] sm:$0xff]
        %v425 = vld [vmem:[%s329 + $0x98] sm:$0xff]
        %v426 = vld [vmem:[%s329 + $0xa0] sm:$0xff]
        %v427 = vld [vmem:[%s329 + $0xa8] sm:$0xff]
        %v428 = vld [vmem:[%s329 + $0xb0] sm:$0xff]
        %v429 = vld [vmem:[%s329 + $0xb8] sm:$0xff]
        %v430 = vld [vmem:[%s329 + $0xc0] sm:$0xff]
        %v431 = vld [vmem:[%s329 + $0xc8] sm:$0xff]
        %v432 = vld [vmem:[%s329 + $0xd0] sm:$0xff]
        %v433 = vld [vmem:[%s329 + $0xd8] sm:$0xff]
        %v434 = vld [vmem:[%s329 + $0xe0] sm:$0xff]
        %v435 = vld [vmem:[%s329 + $0xe8] sm:$0xff]
        %v436 = vld [vmem:[%s329 + $0xf0] sm:$0xff]
        %v437 = vld [vmem:[%s329 + $0xf8] sm:$0xff]
        %v438 = vld [vmem:[#allocation5] sm:$0xff]
        %v439 = vld [vmem:[#allocation5 + $0x8] sm:$0xff]
        %v440 = vld [vmem:[#allocation5 + $0x10] sm:$0xff]
        %v441 = vld [vmem:[#allocation5 + $0x18] sm:$0xff]
        %v442 = vld [vmem:[#allocation5 + $0x20] sm:$0xff]
        %v443 = vld [vmem:[#allocation5 + $0x28] sm:$0xff]
        %v444 = vld [vmem:[#allocation5 + $0x30] sm:$0xff]
        %v445 = vld [vmem:[#allocation5 + $0x38] sm:$0xff]
        %v446 = vld [vmem:[#allocation5 + $0x40] sm:$0xff]
        %v447 = vld [vmem:[#allocation5 + $0x48] sm:$0xff]
        %v448 = vld [vmem:[#allocation5 + $0x50] sm:$0xff]
        %v449 = vld [vmem:[#allocation5 + $0x58] sm:$0xff]
        %v450 = vld [vmem:[#allocation5 + $0x60] sm:$0xff]
        %v451 = vld [vmem:[#allocation5 + $0x68] sm:$0xff]
        %v452 = vld [vmem:[#allocation5 + $0x70] sm:$0xff]
        %v453 = vld [vmem:[#allocation5 + $0x78] sm:$0xff]
        %v454 = vld [vmem:[#allocation5 + $0x80] sm:$0xff]
        %v455 = vld [vmem:[#allocation5 + $0x88] sm:$0xff]
        %v456 = vld [vmem:[#allocation5 + $0x90] sm:$0xff]
        %v457 = vld [vmem:[#allocation5 + $0x98] sm:$0xff]
        %v458 = vld [vmem:[#allocation5 + $0xa0] sm:$0xff]
        %v459 = vld [vmem:[#allocation5 + $0xa8] sm:$0xff]
        %v460 = vld [vmem:[#allocation5 + $0xb0] sm:$0xff]
        %v461 = vld [vmem:[#allocation5 + $0xb8] sm:$0xff]
        %v462 = vld [vmem:[#allocation5 + $0xc0] sm:$0xff]
        %v463 = vld [vmem:[#allocation5 + $0xc8] sm:$0xff]
        %v464 = vld [vmem:[#allocation5 + $0xd0] sm:$0xff]
        %v465 = vld [vmem:[#allocation5 + $0xd8] sm:$0xff]
        %v466 = vld [vmem:[#allocation5 + $0xe0] sm:$0xff]
        %v467 = vld [vmem:[#allocation5 + $0xe8] sm:$0xff]
        %v468 = vld [vmem:[#allocation5 + $0xf0] sm:$0xff]
        %v469 = vld [vmem:[#allocation5 + $0xf8] sm:$0xff]
        %v470 = vld [vmem:[#allocation5 + $0x100] sm:$0xff]
        %v471 = vld [vmem:[#allocation5 + $0x108] sm:$0xff]
        %v472 = vld [vmem:[#allocation5 + $0x110] sm:$0xff]
        %v473 = vld [vmem:[#allocation5 + $0x118] sm:$0xff]
        %v474 = vld [vmem:[#allocation5 + $0x120] sm:$0xff]
        %v475 = vld [vmem:[#allocation5 + $0x128] sm:$0xff]
        %v476 = vld [vmem:[#allocation5 + $0x130] sm:$0xff]
        %v477 = vld [vmem:[#allocation5 + $0x138] sm:$0xff]
        %v478 = vld [vmem:[#allocation5 + $0x140] sm:$0xff]
        %v479 = vld [vmem:[#allocation5 + $0x148] sm:$0xff]
        %v480 = vld [vmem:[#allocation5 + $0x150] sm:$0xff]
        %v481 = vld [vmem:[#allocation5 + $0x158] sm:$0xff]
        %v482 = vld [vmem:[#allocation5 + $0x160] sm:$0xff]
        %v483 = vld [vmem:[#allocation5 + $0x168] sm:$0xff]
        %v484 = vld [vmem:[#allocation5 + $0x170] sm:$0xff]
        %v485 = vld [vmem:[#allocation5 + $0x178] sm:$0xff]
        %v486 = vld [vmem:[#allocation5 + $0x180] sm:$0xff]
        %v487 = vld [vmem:[#allocation5 + $0x188] sm:$0xff]
        %v488 = vld [vmem:[#allocation5 + $0x190] sm:$0xff]
        %v489 = vld [vmem:[#allocation5 + $0x198] sm:$0xff]
        %v490 = vld [vmem:[#allocation5 + $0x1a0] sm:$0xff]
        %v491 = vld [vmem:[#allocation5 + $0x1a8] sm:$0xff]
        %v492 = vld [vmem:[#allocation5 + $0x1b0] sm:$0xff]
        %v493 = vld [vmem:[#allocation5 + $0x1b8] sm:$0xff]
        %v494 = vld [vmem:[#allocation5 + $0x1c0] sm:$0xff]
        %v495 = vld [vmem:[#allocation5 + $0x1c8] sm:$0xff]
        %v496 = vld [vmem:[#allocation5 + $0x1d0] sm:$0xff]
        %v497 = vld [vmem:[#allocation5 + $0x1d8] sm:$0xff]
        %v498 = vld [vmem:[#allocation5 + $0x1e0] sm:$0xff]
        %v499 = vld [vmem:[#allocation5 + $0x1e8] sm:$0xff]
        %v500 = vld [vmem:[#allocation5 + $0x1f0] sm:$0xff]
        %v501 = vld [vmem:[#allocation5 + $0x1f8] sm:$0xff]
        %v502 = vld [vmem:[#allocation5 + $0x200] sm:$0xff]
        %v503 = vld [vmem:[#allocation5 + $0x208] sm:$0xff]
        %v504 = vld [vmem:[#allocation5 + $0x210] sm:$0xff]
        %v505 = vld [vmem:[#allocation5 + $0x218] sm:$0xff]
        %v506 = vld [vmem:[#allocation5 + $0x220] sm:$0xff]
        %v507 = vld [vmem:[#allocation5 + $0x228] sm:$0xff]
        %v508 = vld [vmem:[#allocation5 + $0x230] sm:$0xff]
        %v509 = vld [vmem:[#allocation5 + $0x238] sm:$0xff]
        %v510 = vld [vmem:[#allocation5 + $0x240] sm:$0xff]
        %v511 = vld [vmem:[#allocation5 + $0x248] sm:$0xff]
        %v512 = vld [vmem:[#allocation5 + $0x250] sm:$0xff]
        %v513 = vld [vmem:[#allocation5 + $0x258] sm:$0xff]
        %v514 = vld [vmem:[#allocation5 + $0x260] sm:$0xff]
        %v515 = vld [vmem:[#allocation5 + $0x268] sm:$0xff]
        %v516 = vld [vmem:[#allocation5 + $0x270] sm:$0xff]
        %v517 = vld [vmem:[#allocation5 + $0x278] sm:$0xff]
        %v518 = vld [vmem:[#allocation5 + $0x280] sm:$0xff]
        %v519 = vld [vmem:[#allocation5 + $0x288] sm:$0xff]
        %v520 = vld [vmem:[#allocation5 + $0x290] sm:$0xff]
        %v521 = vld [vmem:[#allocation5 + $0x298] sm:$0xff]
        %v522 = vld [vmem:[#allocation5 + $0x2a0] sm:$0xff]
        %v523 = vld [vmem:[#allocation5 + $0x2a8] sm:$0xff]
        %v524 = vld [vmem:[#allocation5 + $0x2b0] sm:$0xff]
        %v525 = vld [vmem:[#allocation5 + $0x2b8] sm:$0xff]
        %v526 = vld [vmem:[#allocation5 + $0x2c0] sm:$0xff]
        %v527 = vld [vmem:[#allocation5 + $0x2c8] sm:$0xff]
        %v528 = vld [vmem:[#allocation5 + $0x2d0] sm:$0xff]
        %v529 = vld [vmem:[#allocation5 + $0x2d8] sm:$0xff]
        %v530 = vld [vmem:[#allocation5 + $0x2e0] sm:$0xff]
        %v531 = vld [vmem:[#allocation5 + $0x2e8] sm:$0xff]
        %v532 = vld [vmem:[#allocation5 + $0x2f0] sm:$0xff]
        %v533 = vld [vmem:[#allocation5 + $0x2f8] sm:$0xff]
        %v534 = vld [vmem:[#allocation5 + $0x300] sm:$0xff]
        %v535 = vld [vmem:[#allocation5 + $0x308] sm:$0xff]
        %v536 = vld [vmem:[#allocation5 + $0x310] sm:$0xff]
        %v537 = vld [vmem:[#allocation5 + $0x318] sm:$0xff]
        %v538 = vld [vmem:[#allocation5 + $0x320] sm:$0xff]
        %v539 = vld [vmem:[#allocation5 + $0x328] sm:$0xff]
        %v540 = vld [vmem:[#allocation5 + $0x330] sm:$0xff]
        %v541 = vld [vmem:[#allocation5 + $0x338] sm:$0xff]
        %v542 = vld [vmem:[#allocation5 + $0x340] sm:$0xff]
        %v543 = vld [vmem:[#allocation5 + $0x348] sm:$0xff]
        %v544 = vld [vmem:[#allocation5 + $0x350] sm:$0xff]
        %v545 = vld [vmem:[#allocation5 + $0x358] sm:$0xff]
        %v546 = vld [vmem:[#allocation5 + $0x360] sm:$0xff]
        %v547 = vld [vmem:[#allocation5 + $0x368] sm:$0xff]
        %v548 = vld [vmem:[#allocation5 + $0x370] sm:$0xff]
        %v549 = vld [vmem:[#allocation5 + $0x378] sm:$0xff]
        %v550 = vld [vmem:[#allocation5 + $0x380] sm:$0xff]
        %v551 = vld [vmem:[#allocation5 + $0x388] sm:$0xff]
        %v552 = vld [vmem:[#allocation5 + $0x390] sm:$0xff]
        %v553 = vld [vmem:[#allocation5 + $0x398] sm:$0xff]
        %v554 = vld [vmem:[#allocation5 + $0x3a0] sm:$0xff]
        %v555 = vld [vmem:[#allocation5 + $0x3a8] sm:$0xff]
        %v556 = vld [vmem:[#allocation5 + $0x3b0] sm:$0xff]
        %v557 = vld [vmem:[#allocation5 + $0x3b8] sm:$0xff]
        %v558 = vld [vmem:[#allocation5 + $0x3c0] sm:$0xff]
        %v559 = vld [vmem:[#allocation5 + $0x3c8] sm:$0xff]
        %v560 = vld [vmem:[#allocation5 + $0x3d0] sm:$0xff]
        %v561 = vld [vmem:[#allocation5 + $0x3d8] sm:$0xff]
        %v562 = vld [vmem:[#allocation5 + $0x3e0] sm:$0xff]
        %v563 = vld [vmem:[#allocation5 + $0x3e8] sm:$0xff]
        %v564 = vld [vmem:[#allocation5 + $0x3f0] sm:$0xff]
        %v565 = vld [vmem:[#allocation5 + $0x3f8] sm:$0xff]
        %v566 = vld [vmem:[#allocation5 + $0x400] sm:$0xff]
        %v567 = vld [vmem:[#allocation5 + $0x408] sm:$0xff]
        %v568 = vld [vmem:[#allocation5 + $0x410] sm:$0xff]
        %v569 = vld [vmem:[#allocation5 + $0x418] sm:$0xff]
        %v570 = vld [vmem:[#allocation5 + $0x420] sm:$0xff]
        %v571 = vld [vmem:[#allocation5 + $0x428] sm:$0xff]
        %v572 = vld [vmem:[#allocation5 + $0x430] sm:$0xff]
        %v573 = vld [vmem:[#allocation5 + $0x438] sm:$0xff]
        %v574 = vld [vmem:[#allocation5 + $0x440] sm:$0xff]
        %v575 = vld [vmem:[#allocation5 + $0x448] sm:$0xff]
        %v576 = vld [vmem:[#allocation5 + $0x450] sm:$0xff]
        %v577 = vld [vmem:[#allocation5 + $0x458] sm:$0xff]
        %v578 = vld [vmem:[#allocation5 + $0x460] sm:$0xff]
        %v579 = vld [vmem:[#allocation5 + $0x468] sm:$0xff]
        %v580 = vld [vmem:[#allocation5 + $0x470] sm:$0xff]
        %v581 = vld [vmem:[#allocation5 + $0x478] sm:$0xff]
        %v582 = vld [vmem:[#allocation5 + $0x480] sm:$0xff]
        %v583 = vld [vmem:[#allocation5 + $0x488] sm:$0xff]
        %v584 = vld [vmem:[#allocation5 + $0x490] sm:$0xff]
        %v585 = vld [vmem:[#allocation5 + $0x498] sm:$0xff]
        %v586 = vld [vmem:[#allocation5 + $0x4a0] sm:$0xff]
        %v587 = vld [vmem:[#allocation5 + $0x4a8] sm:$0xff]
        %v588 = vld [vmem:[#allocation5 + $0x4b0] sm:$0xff]
        %v589 = vld [vmem:[#allocation5 + $0x4b8] sm:$0xff]
        %v590 = vld [vmem:[#allocation5 + $0x4c0] sm:$0xff]
        %v591 = vld [vmem:[#allocation5 + $0x4c8] sm:$0xff]
        %v592 = vld [vmem:[#allocation5 + $0x4d0] sm:$0xff]
        %v593 = vld [vmem:[#allocation5 + $0x4d8] sm:$0xff]
        %v594 = vld [vmem:[#allocation5 + $0x4e0] sm:$0xff]
        %v595 = vld [vmem:[#allocation5 + $0x4e8] sm:$0xff]
        %v596 = vld [vmem:[#allocation5 + $0x4f0] sm:$0xff]
        %v597 = vld [vmem:[#allocation5 + $0x4f8] sm:$0xff]
        %v598 = vld [vmem:[#allocation5 + $0x500] sm:$0xff]
        %v599 = vld [vmem:[#allocation5 + $0x508] sm:$0xff]
        %v600 = vld [vmem:[#allocation5 + $0x510] sm:$0xff]
        %v601 = vld [vmem:[#allocation5 + $0x518] sm:$0xff]
        %v602 = vld [vmem:[#allocation5 + $0x520] sm:$0xff]
        %v603 = vld [vmem:[#allocation5 + $0x528] sm:$0xff]
        %v604 = vld [vmem:[#allocation5 + $0x530] sm:$0xff]
        %v605 = vld [vmem:[#allocation5 + $0x538] sm:$0xff]
        %v606 = vld [vmem:[#allocation5 + $0x540] sm:$0xff]
        %v607 = vld [vmem:[#allocation5 + $0x548] sm:$0xff]
        %v608 = vld [vmem:[#allocation5 + $0x550] sm:$0xff]
        %v609 = vld [vmem:[#allocation5 + $0x558] sm:$0xff]
        %v610 = vld [vmem:[#allocation5 + $0x560] sm:$0xff]
        %v611 = vld [vmem:[#allocation5 + $0x568] sm:$0xff]
        %v612 = vld [vmem:[#allocation5 + $0x570] sm:$0xff]
        %v613 = vld [vmem:[#allocation5 + $0x578] sm:$0xff]
        %v614 = vld [vmem:[#allocation5 + $0x580] sm:$0xff]
        %v615 = vld [vmem:[#allocation5 + $0x588] sm:$0xff]
        %v616 = vld [vmem:[#allocation5 + $0x590] sm:$0xff]
        %v617 = vld [vmem:[#allocation5 + $0x598] sm:$0xff]
        %v618 = vld [vmem:[#allocation5 + $0x5a0] sm:$0xff]
        %v619 = vld [vmem:[#allocation5 + $0x5a8] sm:$0xff]
        %v620 = vld [vmem:[#allocation5 + $0x5b0] sm:$0xff]
        %v621 = vld [vmem:[#allocation5 + $0x5b8] sm:$0xff]
        %v622 = vld [vmem:[#allocation5 + $0x5c0] sm:$0xff]
        %v623 = vld [vmem:[#allocation5 + $0x5c8] sm:$0xff]
        %v624 = vld [vmem:[#allocation5 + $0x5d0] sm:$0xff]
        %v625 = vld [vmem:[#allocation5 + $0x5d8] sm:$0xff]
        %v626 = vld [vmem:[#allocation5 + $0x5e0] sm:$0xff]
        %v627 = vld [vmem:[#allocation5 + $0x5e8] sm:$0xff]
        %v628 = vld [vmem:[#allocation5 + $0x5f0] sm:$0xff]
        %v629 = vld [vmem:[#allocation5 + $0x5f8] sm:$0xff]
        %630 = vmatprep.subr.mxu0 %v529
        %631 = vmatpush1.msra.mxu0 %v528
        %632 = vmatprep.subr.mxu0 %v523
        %633 = vmatpush1.msra.mxu0 %v522
        %634 = vmatprep.subr.mxu0 %v517
        %635 = vmatpush1.msra.mxu0 %v516
        %636 = vmatprep.subr.mxu0 %v511
        %637 = vmatpush1.msra.mxu0 %v510
        %638 = vmatprep.subr.mxu0 %v505
        %639 = vmatpush1.msra.mxu0 %v504
        %640 = vmatprep.subr.mxu0 %v499
        %641 = vmatpush1.msra.mxu0 %v498
        %642 = vmatprep.subr.mxu0 %v493
        %643 = vmatpush1.msra.mxu0 %v492
        %644 = vmatprep.subr.mxu0 %v487
        %645 = vmatpush1.msra.mxu0 %v486
        %646 = vmatprep.subr.mxu0 %v481
        %647 = vmatpush1.msra.mxu0 %v480
        %648 = vmatprep.subr.mxu0 %v475
        %649 = vmatpush1.msra.mxu0 %v474
        %650 = vmatprep.subr.mxu0 %v469
        %651 = vmatpush1.msra.mxu0 %v468
        %652 = vmatprep.subr.mxu0 %v463
        %653 = vmatpush1.msra.mxu0 %v462
        %654 = vmatprep.subr.mxu0 %v457
        %655 = vmatpush1.msra.mxu0 %v456
        %656 = vmatprep.subr.mxu0 %v451
        %657 = vmatpush1.msra.mxu0 %v450
        %658 = vmatprep.subr.mxu0 %v445
        %659 = vmatpush1.msra.mxu0 %v444
        %660 = vmatprep.subr.mxu0 %v439
        %661 = vmatpush1.msra.mxu0 %v438
        %662 = vmatprep.subr.mxu0 %v625
        %663 = vmatpush2.msra.mxu0 %v624
        %664 = vmatprep.subr.mxu0 %v619
        %665 = vmatpush2.msra.mxu0 %v618
        %666 = vmatprep.subr.mxu0 %v613
        %667 = vmatpush2.msra.mxu0 %v612
        %668 = vmatprep.subr.mxu0 %v607
        %669 = vmatpush2.msra.mxu0 %v606
        %670 = vmatprep.subr.mxu0 %v601
        %671 = vmatpush2.msra.mxu0 %v600
        %672 = vmatprep.subr.mxu0 %v595
        %673 = vmatpush2.msra.mxu0 %v594
        %674 = vmatprep.subr.mxu0 %v589
        %675 = vmatpush2.msra.mxu0 %v588
        %676 = vmatprep.subr.mxu0 %v583
        %677 = vmatpush2.msra.mxu0 %v582
        %678 = vmatprep.subr.mxu0 %v577
        %679 = vmatpush2.msra.mxu0 %v576
        %680 = vmatprep.subr.mxu0 %v571
        %681 = vmatpush2.msra.mxu0 %v570
        %682 = vmatprep.subr.mxu0 %v565
        %683 = vmatpush2.msra.mxu0 %v564
        %684 = vmatprep.subr.mxu0 %v559
        %685 = vmatpush2.msra.mxu0 %v558
        %686 = vmatprep.subr.mxu0 %v553
        %687 = vmatpush2.msra.mxu0 %v552
        %688 = vmatprep.subr.mxu0 %v547
        %689 = vmatpush2.msra.mxu0 %v546
        %690 = vmatprep.subr.mxu0 %v541
        %691 = vmatpush2.msra.mxu0 %v540
        %692 = vmatprep.subr.mxu0 %v535
        %693 = vmatpush2.msra.mxu0 %v534
        %694 = vmatprep.mubr.f32.mxu0 %v407
        %695 = vmatmul.mubr.f32.gmra.mxu0 %v406
        %v696 = vpop.f32.mrf.mxu0
        %v697 = vadd.f32 0.0, %v696
        %v698 = vpop.f32.mrf.mxu0
        %v699 = vadd.f32 0.0, %v698
        %700 = vmatprep.mubr.f32.mxu0 %v409
        %701 = vmatmul.mubr.f32.gmra.mxu0 %v408
        %v702 = vpop.f32.mrf.mxu0
        %v703 = vadd.f32 0.0, %v702
        %v704 = vpop.f32.mrf.mxu0
        %v705 = vadd.f32 0.0, %v704
        %706 = vmatprep.mubr.f32.mxu0 %v411
        %707 = vmatmul.mubr.f32.gmra.mxu0 %v410
        %v708 = vpop.f32.mrf.mxu0
        %v709 = vadd.f32 0.0, %v708
        %v710 = vpop.f32.mrf.mxu0
        %v711 = vadd.f32 0.0, %v710
        %712 = vmatprep.mubr.f32.mxu0 %v413
        %713 = vmatmul.mubr.f32.gmra.mxu0 %v412
        %v714 = vpop.f32.mrf.mxu0
        %v715 = vadd.f32 0.0, %v714
        %v716 = vpop.f32.mrf.mxu0
        %v717 = vadd.f32 0.0, %v716
        %718 = vmatprep.mubr.f32.mxu0 %v415
        %719 = vmatmul.mubr.f32.gmra.mxu0 %v414
        %v720 = vpop.f32.mrf.mxu0
        %v721 = vadd.f32 0.0, %v720
        %v722 = vpop.f32.mrf.mxu0
        %v723 = vadd.f32 0.0, %v722
        %724 = vmatprep.mubr.f32.mxu0 %v417
        %725 = vmatmul.mubr.f32.gmra.mxu0 %v416
        %v726 = vpop.f32.mrf.mxu0
        %v727 = vadd.f32 0.0, %v726
        %v728 = vpop.f32.mrf.mxu0
        %v729 = vadd.f32 0.0, %v728
        %730 = vmatprep.mubr.f32.mxu0 %v419
        %731 = vmatmul.mubr.f32.gmra.mxu0 %v418
        %v732 = vpop.f32.mrf.mxu0
        %v733 = vadd.f32 0.0, %v732
        %v734 = vpop.f32.mrf.mxu0
        %v735 = vadd.f32 0.0, %v734
        %736 = vmatprep.mubr.f32.mxu0 %v421
        %737 = vmatmul.mubr.f32.gmra.mxu0 %v420
        %v738 = vpop.f32.mrf.mxu0
        %v739 = vadd.f32 0.0, %v738
        %v740 = vpop.f32.mrf.mxu0
        %v741 = vadd.f32 0.0, %v740
        %742 = vmatprep.mubr.f32.mxu0 %v423
        %743 = vmatmul.mubr.f32.gmra.mxu0 %v422
        %v744 = vpop.f32.mrf.mxu0
        %v745 = vadd.f32 0.0, %v744
        %v746 = vpop.f32.mrf.mxu0
        %v747 = vadd.f32 0.0, %v746
        %748 = vmatprep.mubr.f32.mxu0 %v425
        %749 = vmatmul.mubr.f32.gmra.mxu0 %v424
        %v750 = vpop.f32.mrf.mxu0
        %v751 = vadd.f32 0.0, %v750
        %v752 = vpop.f32.mrf.mxu0
        %v753 = vadd.f32 0.0, %v752
        %754 = vmatprep.mubr.f32.mxu0 %v427
        %755 = vmatmul.mubr.f32.gmra.mxu0 %v426
        %v756 = vpop.f32.mrf.mxu0
        %v757 = vadd.f32 0.0, %v756
        %v758 = vpop.f32.mrf.mxu0
        %v759 = vadd.f32 0.0, %v758
        %760 = vmatprep.mubr.f32.mxu0 %v429
        %761 = vmatmul.mubr.f32.gmra.mxu0 %v428
        %v762 = vpop.f32.mrf.mxu0
        %v763 = vadd.f32 0.0, %v762
        %v764 = vpop.f32.mrf.mxu0
        %v765 = vadd.f32 0.0, %v764
        %766 = vmatprep.mubr.f32.mxu0 %v431
        %767 = vmatmul.mubr.f32.gmra.mxu0 %v430
        %v768 = vpop.f32.mrf.mxu0
        %v769 = vadd.f32 0.0, %v768
        %v770 = vpop.f32.mrf.mxu0
        %v771 = vadd.f32 0.0, %v770
        %772 = vmatprep.mubr.f32.mxu0 %v433
        %773 = vmatmul.mubr.f32.gmra.mxu0 %v432
        %v774 = vpop.f32.mrf.mxu0
        %v775 = vadd.f32 0.0, %v774
        %v776 = vpop.f32.mrf.mxu0
        %v777 = vadd.f32 0.0, %v776
        %778 = vmatprep.mubr.f32.mxu0 %v435
        %779 = vmatmul.mubr.f32.gmra.mxu0 %v434
        %v780 = vpop.f32.mrf.mxu0
        %v781 = vadd.f32 0.0, %v780
        %v782 = vpop.f32.mrf.mxu0
        %v783 = vadd.f32 0.0, %v782
        %784 = vmatprep.mubr.f32.mxu0 %v437
        %785 = vmatmul.mubr.f32.gmra.mxu0 %v436
        %v786 = vpop.f32.mrf.mxu0
        %v787 = vadd.f32 0.0, %v786
        %v788 = vpop.f32.mrf.mxu0
        %v789 = vadd.f32 0.0, %v788
        %790 = vdwg.mxu0
        %791 = vmatprep.subr.mxu0 %v531
        %792 = vmatpush1.msra.mxu0 %v530
        %793 = vmatprep.subr.mxu0 %v525
        %794 = vmatpush1.msra.mxu0 %v524
        %795 = vmatprep.subr.mxu0 %v519
        %796 = vmatpush1.msra.mxu0 %v518
        %797 = vmatprep.subr.mxu0 %v513
        %798 = vmatpush1.msra.mxu0 %v512
        %799 = vmatprep.subr.mxu0 %v507
        %800 = vmatpush1.msra.mxu0 %v506
        %801 = vmatprep.subr.mxu0 %v501
        %802 = vmatpush1.msra.mxu0 %v500
        %803 = vmatprep.subr.mxu0 %v495
        %804 = vmatpush1.msra.mxu0 %v494
        %805 = vmatprep.subr.mxu0 %v489
        %806 = vmatpush1.msra.mxu0 %v488
        %807 = vmatprep.subr.mxu0 %v483
        %808 = vmatpush1.msra.mxu0 %v482
        %809 = vmatprep.subr.mxu0 %v477
        %810 = vmatpush1.msra.mxu0 %v476
        %811 = vmatprep.subr.mxu0 %v471
        %812 = vmatpush1.msra.mxu0 %v470
        %813 = vmatprep.subr.mxu0 %v465
        %814 = vmatpush1.msra.mxu0 %v464
        %815 = vmatprep.subr.mxu0 %v459
        %816 = vmatpush1.msra.mxu0 %v458
        %817 = vmatprep.subr.mxu0 %v453
        %818 = vmatpush1.msra.mxu0 %v452
        %819 = vmatprep.subr.mxu0 %v447
        %820 = vmatpush1.msra.mxu0 %v446
        %821 = vmatprep.subr.mxu0 %v441
        %822 = vmatpush1.msra.mxu0 %v440
        %823 = vmatprep.subr.mxu0 %v627
        %824 = vmatpush2.msra.mxu0 %v626
        %825 = vmatprep.subr.mxu0 %v621
        %826 = vmatpush2.msra.mxu0 %v620
        %827 = vmatprep.subr.mxu0 %v615
        %828 = vmatpush2.msra.mxu0 %v614
        %829 = vmatprep.subr.mxu0 %v609
        %830 = vmatpush2.msra.mxu0 %v608
        %831 = vmatprep.subr.mxu0 %v603
        %832 = vmatpush2.msra.mxu0 %v602
        %833 = vmatprep.subr.mxu0 %v597
        %834 = vmatpush2.msra.mxu0 %v596
        %835 = vmatprep.subr.mxu0 %v591
        %836 = vmatpush2.msra.mxu0 %v590
        %837 = vmatprep.subr.mxu0 %v585
        %838 = vmatpush2.msra.mxu0 %v584
        %839 = vmatprep.subr.mxu0 %v579
        %840 = vmatpush2.msra.mxu0 %v578
        %841 = vmatprep.subr.mxu0 %v573
        %842 = vmatpush2.msra.mxu0 %v572
        %843 = vmatprep.subr.mxu0 %v567
        %844 = vmatpush2.msra.mxu0 %v566
        %845 = vmatprep.subr.mxu0 %v561
        %846 = vmatpush2.msra.mxu0 %v560
        %847 = vmatprep.subr.mxu0 %v555
        %848 = vmatpush2.msra.mxu0 %v554
        %849 = vmatprep.subr.mxu0 %v549
        %850 = vmatpush2.msra.mxu0 %v548
        %851 = vmatprep.subr.mxu0 %v543
        %852 = vmatpush2.msra.mxu0 %v542
        %853 = vmatprep.subr.mxu0 %v537
        %854 = vmatpush2.msra.mxu0 %v536
        %855 = vmatprep.mubr.f32.mxu0 %v407
        %856 = vmatmul.mubr.f32.gmra.mxu0 %v406
        %v857 = vpop.f32.mrf.mxu0
        %v858 = vadd.f32 0.0, %v857
        %v859 = vpop.f32.mrf.mxu0
        %v860 = vadd.f32 0.0, %v859
        %861 = vmatprep.mubr.f32.mxu0 %v409
        %862 = vmatmul.mubr.f32.gmra.mxu0 %v408
        %v863 = vpop.f32.mrf.mxu0
        %v864 = vadd.f32 0.0, %v863
        %v865 = vpop.f32.mrf.mxu0
        %v866 = vadd.f32 0.0, %v865
        %867 = vmatprep.mubr.f32.mxu0 %v411
        %868 = vmatmul.mubr.f32.gmra.mxu0 %v410
        %v869 = vpop.f32.mrf.mxu0
        %v870 = vadd.f32 0.0, %v869
        %v871 = vpop.f32.mrf.mxu0
        %v872 = vadd.f32 0.0, %v871
        %873 = vmatprep.mubr.f32.mxu0 %v413
        %874 = vmatmul.mubr.f32.gmra.mxu0 %v412
        %v875 = vpop.f32.mrf.mxu0
        %v876 = vadd.f32 0.0, %v875
        %v877 = vpop.f32.mrf.mxu0
        %v878 = vadd.f32 0.0, %v877
        %879 = vmatprep.mubr.f32.mxu0 %v415
        %880 = vmatmul.mubr.f32.gmra.mxu0 %v414
        %v881 = vpop.f32.mrf.mxu0
        %v882 = vadd.f32 0.0, %v881
        %v883 = vpop.f32.mrf.mxu0
        %v884 = vadd.f32 0.0, %v883
        %885 = vmatprep.mubr.f32.mxu0 %v417
        %886 = vmatmul.mubr.f32.gmra.mxu0 %v416
        %v887 = vpop.f32.mrf.mxu0
        %v888 = vadd.f32 0.0, %v887
        %v889 = vpop.f32.mrf.mxu0
        %v890 = vadd.f32 0.0, %v889
        %891 = vmatprep.mubr.f32.mxu0 %v419
        %892 = vmatmul.mubr.f32.gmra.mxu0 %v418
        %v893 = vpop.f32.mrf.mxu0
        %v894 = vadd.f32 0.0, %v893
        %v895 = vpop.f32.mrf.mxu0
        %v896 = vadd.f32 0.0, %v895
        %897 = vmatprep.mubr.f32.mxu0 %v421
        %898 = vmatmul.mubr.f32.gmra.mxu0 %v420
        %v899 = vpop.f32.mrf.mxu0
        %v900 = vadd.f32 0.0, %v899
        %v901 = vpop.f32.mrf.mxu0
        %v902 = vadd.f32 0.0, %v901
        %903 = vmatprep.mubr.f32.mxu0 %v423
        %904 = vmatmul.mubr.f32.gmra.mxu0 %v422
        %v905 = vpop.f32.mrf.mxu0
        %v906 = vadd.f32 0.0, %v905
        %v907 = vpop.f32.mrf.mxu0
        %v908 = vadd.f32 0.0, %v907
        %909 = vmatprep.mubr.f32.mxu0 %v425
        %910 = vmatmul.mubr.f32.gmra.mxu0 %v424
        %v911 = vpop.f32.mrf.mxu0
        %v912 = vadd.f32 0.0, %v911
        %v913 = vpop.f32.mrf.mxu0
        %v914 = vadd.f32 0.0, %v913
        %915 = vmatprep.mubr.f32.mxu0 %v427
        %916 = vmatmul.mubr.f32.gmra.mxu0 %v426
        %v917 = vpop.f32.mrf.mxu0
        %v918 = vadd.f32 0.0, %v917
        %v919 = vpop.f32.mrf.mxu0
        %v920 = vadd.f32 0.0, %v919
        %921 = vmatprep.mubr.f32.mxu0 %v429
        %922 = vmatmul.mubr.f32.gmra.mxu0 %v428
        %v923 = vpop.f32.mrf.mxu0
        %v924 = vadd.f32 0.0, %v923
        %v925 = vpop.f32.mrf.mxu0
        %v926 = vadd.f32 0.0, %v925
        %927 = vmatprep.mubr.f32.mxu0 %v431
        %928 = vmatmul.mubr.f32.gmra.mxu0 %v430
        %v929 = vpop.f32.mrf.mxu0
        %v930 = vadd.f32 0.0, %v929
        %v931 = vpop.f32.mrf.mxu0
        %v932 = vadd.f32 0.0, %v931
        %933 = vmatprep.mubr.f32.mxu0 %v433
        %934 = vmatmul.mubr.f32.gmra.mxu0 %v432
        %v935 = vpop.f32.mrf.mxu0
        %v936 = vadd.f32 0.0, %v935
        %v937 = vpop.f32.mrf.mxu0
        %v938 = vadd.f32 0.0, %v937
        %939 = vmatprep.mubr.f32.mxu0 %v435
        %940 = vmatmul.mubr.f32.gmra.mxu0 %v434
        %v941 = vpop.f32.mrf.mxu0
        %v942 = vadd.f32 0.0, %v941
        %v943 = vpop.f32.mrf.mxu0
        %v944 = vadd.f32 0.0, %v943
        %945 = vmatprep.mubr.f32.mxu0 %v437
        %946 = vmatmul.mubr.f32.gmra.mxu0 %v436
        %v947 = vpop.f32.mrf.mxu0
        %v948 = vadd.f32 0.0, %v947
        %v949 = vpop.f32.mrf.mxu0
        %v950 = vadd.f32 0.0, %v949
        %951 = vdwg.mxu0
        %952 = vmatprep.subr.mxu0 %v533
        %953 = vmatpush1.msra.mxu0 %v532
        %954 = vmatprep.subr.mxu0 %v527
        %955 = vmatpush1.msra.mxu0 %v526
        %956 = vmatprep.subr.mxu0 %v521
        %957 = vmatpush1.msra.mxu0 %v520
        %958 = vmatprep.subr.mxu0 %v515
        %959 = vmatpush1.msra.mxu0 %v514
        %960 = vmatprep.subr.mxu0 %v509
        %961 = vmatpush1.msra.mxu0 %v508
        %962 = vmatprep.subr.mxu0 %v503
        %963 = vmatpush1.msra.mxu0 %v502
        %964 = vmatprep.subr.mxu0 %v497
        %965 = vmatpush1.msra.mxu0 %v496
        %966 = vmatprep.subr.mxu0 %v491
        %967 = vmatpush1.msra.mxu0 %v490
        %968 = vmatprep.subr.mxu0 %v485
        %969 = vmatpush1.msra.mxu0 %v484
        %970 = vmatprep.subr.mxu0 %v479
        %971 = vmatpush1.msra.mxu0 %v478
        %972 = vmatprep.subr.mxu0 %v473
        %973 = vmatpush1.msra.mxu0 %v472
        %974 = vmatprep.subr.mxu0 %v467
        %975 = vmatpush1.msra.mxu0 %v466
        %976 = vmatprep.subr.mxu0 %v461
        %977 = vmatpush1.msra.mxu0 %v460
        %978 = vmatprep.subr.mxu0 %v455
        %979 = vmatpush1.msra.mxu0 %v454
        %980 = vmatprep.subr.mxu0 %v449
        %981 = vmatpush1.msra.mxu0 %v448
        %982 = vmatprep.subr.mxu0 %v443
        %983 = vmatpush1.msra.mxu0 %v442
        %984 = vmatprep.subr.mxu0 %v629
        %985 = vmatpush2.msra.mxu0 %v628
        %986 = vmatprep.subr.mxu0 %v623
        %987 = vmatpush2.msra.mxu0 %v622
        %988 = vmatprep.subr.mxu0 %v617
        %989 = vmatpush2.msra.mxu0 %v616
        %990 = vmatprep.subr.mxu0 %v611
        %991 = vmatpush2.msra.mxu0 %v610
        %992 = vmatprep.subr.mxu0 %v605
        %993 = vmatpush2.msra.mxu0 %v604
        %994 = vmatprep.subr.mxu0 %v599
        %995 = vmatpush2.msra.mxu0 %v598
        %996 = vmatprep.subr.mxu0 %v593
        %997 = vmatpush2.msra.mxu0 %v592
        %998 = vmatprep.subr.mxu0 %v587
        %999 = vmatpush2.msra.mxu0 %v586
        %1000 = vmatprep.subr.mxu0 %v581
        %1001 = vmatpush2.msra.mxu0 %v580
        %1002 = vmatprep.subr.mxu0 %v575
        %1003 = vmatpush2.msra.mxu0 %v574
        %1004 = vmatprep.subr.mxu0 %v569
        %1005 = vmatpush2.msra.mxu0 %v568
        %1006 = vmatprep.subr.mxu0 %v563
        %1007 = vmatpush2.msra.mxu0 %v562
        %1008 = vmatprep.subr.mxu0 %v557
        %1009 = vmatpush2.msra.mxu0 %v556
        %1010 = vmatprep.subr.mxu0 %v551
        %1011 = vmatpush2.msra.mxu0 %v550
        %1012 = vmatprep.subr.mxu0 %v545
        %1013 = vmatpush2.msra.mxu0 %v544
        %1014 = vmatprep.subr.mxu0 %v539
        %1015 = vmatpush2.msra.mxu0 %v538
        %1016 = vmatprep.mubr.f32.mxu0 %v407
        %1017 = vmatmul.mubr.f32.gmra.mxu0 %v406
        %v1018 = vpop.f32.mrf.mxu0
        %v1019 = vadd.f32 0.0, %v1018
        %v1020 = vpop.f32.mrf.mxu0
        %v1021 = vadd.f32 0.0, %v1020
        %1022 = vmatprep.mubr.f32.mxu0 %v409
        %1023 = vmatmul.mubr.f32.gmra.mxu0 %v408
        %v1024 = vpop.f32.mrf.mxu0
        %v1025 = vadd.f32 0.0, %v1024
        %v1026 = vpop.f32.mrf.mxu0
        %v1027 = vadd.f32 0.0, %v1026
        %1028 = vmatprep.mubr.f32.mxu0 %v411
        %1029 = vmatmul.mubr.f32.gmra.mxu0 %v410
        %v1030 = vpop.f32.mrf.mxu0
        %v1031 = vadd.f32 0.0, %v1030
        %v1032 = vpop.f32.mrf.mxu0
        %v1033 = vadd.f32 0.0, %v1032
        %1034 = vmatprep.mubr.f32.mxu0 %v413
        %1035 = vmatmul.mubr.f32.gmra.mxu0 %v412
        %v1036 = vpop.f32.mrf.mxu0
        %v1037 = vadd.f32 0.0, %v1036
        %v1038 = vpop.f32.mrf.mxu0
        %v1039 = vadd.f32 0.0, %v1038
        %1040 = vmatprep.mubr.f32.mxu0 %v415
        %1041 = vmatmul.mubr.f32.gmra.mxu0 %v414
        %v1042 = vpop.f32.mrf.mxu0
        %v1043 = vadd.f32 0.0, %v1042
        %v1044 = vpop.f32.mrf.mxu0
        %v1045 = vadd.f32 0.0, %v1044
        %1046 = vmatprep.mubr.f32.mxu0 %v417
        %1047 = vmatmul.mubr.f32.gmra.mxu0 %v416
        %v1048 = vpop.f32.mrf.mxu0
        %v1049 = vadd.f32 0.0, %v1048
        %v1050 = vpop.f32.mrf.mxu0
        %v1051 = vadd.f32 0.0, %v1050
        %1052 = vmatprep.mubr.f32.mxu0 %v419
        %1053 = vmatmul.mubr.f32.gmra.mxu0 %v418
        %v1054 = vpop.f32.mrf.mxu0
        %v1055 = vadd.f32 0.0, %v1054
        %v1056 = vpop.f32.mrf.mxu0
        %v1057 = vadd.f32 0.0, %v1056
        %1058 = vmatprep.mubr.f32.mxu0 %v421
        %1059 = vmatmul.mubr.f32.gmra.mxu0 %v420
        %v1060 = vpop.f32.mrf.mxu0
        %v1061 = vadd.f32 0.0, %v1060
        %v1062 = vpop.f32.mrf.mxu0
        %v1063 = vadd.f32 0.0, %v1062
        %1064 = vmatprep.mubr.f32.mxu0 %v423
        %1065 = vmatmul.mubr.f32.gmra.mxu0 %v422
        %v1066 = vpop.f32.mrf.mxu0
        %v1067 = vadd.f32 0.0, %v1066
        %v1068 = vpop.f32.mrf.mxu0
        %v1069 = vadd.f32 0.0, %v1068
        %1070 = vmatprep.mubr.f32.mxu0 %v425
        %1071 = vmatmul.mubr.f32.gmra.mxu0 %v424
        %v1072 = vpop.f32.mrf.mxu0
        %v1073 = vadd.f32 0.0, %v1072
        %v1074 = vpop.f32.mrf.mxu0
        %v1075 = vadd.f32 0.0, %v1074
        %1076 = vmatprep.mubr.f32.mxu0 %v427
        %1077 = vmatmul.mubr.f32.gmra.mxu0 %v426
        %v1078 = vpop.f32.mrf.mxu0
        %v1079 = vadd.f32 0.0, %v1078
        %v1080 = vpop.f32.mrf.mxu0
        %v1081 = vadd.f32 0.0, %v1080
        %1082 = vmatprep.mubr.f32.mxu0 %v429
        %1083 = vmatmul.mubr.f32.gmra.mxu0 %v428
        %v1084 = vpop.f32.mrf.mxu0
        %v1085 = vadd.f32 0.0, %v1084
        %v1086 = vpop.f32.mrf.mxu0
        %v1087 = vadd.f32 0.0, %v1086
        %1088 = vmatprep.mubr.f32.mxu0 %v431
        %1089 = vmatmul.mubr.f32.gmra.mxu0 %v430
        %v1090 = vpop.f32.mrf.mxu0
        %v1091 = vadd.f32 0.0, %v1090
        %v1092 = vpop.f32.mrf.mxu0
        %v1093 = vadd.f32 0.0, %v1092
        %1094 = vmatprep.mubr.f32.mxu0 %v433
        %1095 = vmatmul.mubr.f32.gmra.mxu0 %v432
        %v1096 = vpop.f32.mrf.mxu0
        %v1097 = vadd.f32 0.0, %v1096
        %v1098 = vpop.f32.mrf.mxu0
        %v1099 = vadd.f32 0.0, %v1098
        %1100 = vmatprep.mubr.f32.mxu0 %v435
        %1101 = vmatmul.mubr.f32.gmra.mxu0 %v434
        %v1102 = vpop.f32.mrf.mxu0
        %v1103 = vadd.f32 0.0, %v1102
        %v1104 = vpop.f32.mrf.mxu0
        %v1105 = vadd.f32 0.0, %v1104
        %1106 = vmatprep.mubr.f32.mxu0 %v437
        %1107 = vmatmul.mubr.f32.gmra.mxu0 %v436
        %v1108 = vpop.f32.mrf.mxu0
        %v1109 = vadd.f32 0.0, %v1108
        %v1110 = vpop.f32.mrf.mxu0
        %v1111 = vadd.f32 0.0, %v1110
        %1112 = vdwg.mxu0
        %v1113 = vld [vmem:[%s342] sm:$0xff]
        %v1114 = vld [vmem:[%s342 + $0x8] sm:$0xff]
        %v1115 = vld [vmem:[%s342 + $0x10] sm:$0xff]
        %v1116 = vld [vmem:[%s342 + $0x18] sm:$0xff]
        %v1117 = vld [vmem:[%s342 + $0x20] sm:$0xff]
        %v1118 = vld [vmem:[%s342 + $0x28] sm:$0xff]
        %v1119 = vld [vmem:[%s342 + $0x30] sm:$0xff]
        %v1120 = vld [vmem:[%s342 + $0x38] sm:$0xff]
        %v1121 = vld [vmem:[%s342 + $0x40] sm:$0xff]
        %v1122 = vld [vmem:[%s342 + $0x48] sm:$0xff]
        %v1123 = vld [vmem:[%s342 + $0x50] sm:$0xff]
        %v1124 = vld [vmem:[%s342 + $0x58] sm:$0xff]
        %v1125 = vld [vmem:[%s342 + $0x60] sm:$0xff]
        %v1126 = vld [vmem:[%s342 + $0x68] sm:$0xff]
        %v1127 = vld [vmem:[%s342 + $0x70] sm:$0xff]
        %v1128 = vld [vmem:[%s342 + $0x78] sm:$0xff]
        %v1129 = vld [vmem:[%s351] sm:$0xff]
        %v1130 = vld [vmem:[%s351 + $0x8] sm:$0xff]
        %v1131 = vld [vmem:[%s351 + $0x10] sm:$0xff]
        %v1132 = vld [vmem:[%s351 + $0x18] sm:$0xff]
        %v1133 = vld [vmem:[%s351 + $0x20] sm:$0xff]
        %v1134 = vld [vmem:[%s351 + $0x28] sm:$0xff]
        %v1135 = vld [vmem:[%s351 + $0x30] sm:$0xff]
        %v1136 = vld [vmem:[%s351 + $0x38] sm:$0xff]
        %v1137 = vld [vmem:[%s351 + $0x40] sm:$0xff]
        %v1138 = vld [vmem:[%s351 + $0x48] sm:$0xff]
        %v1139 = vld [vmem:[%s351 + $0x50] sm:$0xff]
        %v1140 = vld [vmem:[%s351 + $0x58] sm:$0xff]
        %v1141 = vld [vmem:[%s351 + $0x60] sm:$0xff]
        %v1142 = vld [vmem:[%s351 + $0x68] sm:$0xff]
        %v1143 = vld [vmem:[%s351 + $0x70] sm:$0xff]
        %v1144 = vld [vmem:[%s351 + $0x78] sm:$0xff]
        %v1145 = vmul.f32 %v697, %v1113
        %v1146 = vmul.f32 %v703, %v1114
        %v1147 = vmul.f32 %v709, %v1115
        %v1148 = vmul.f32 %v715, %v1116
        %v1149 = vmul.f32 %v721, %v1117
        %v1150 = vmul.f32 %v727, %v1118
        %v1151 = vmul.f32 %v733, %v1119
        %v1152 = vmul.f32 %v739, %v1120
        %v1153 = vmul.f32 %v745, %v1121
        %v1154 = vmul.f32 %v751, %v1122
        %v1155 = vmul.f32 %v757, %v1123
        %v1156 = vmul.f32 %v763, %v1124
        %v1157 = vmul.f32 %v769, %v1125
        %v1158 = vmul.f32 %v775, %v1126
        %v1159 = vmul.f32 %v781, %v1127
        %v1160 = vmul.f32 %v787, %v1128
        %1161 = vrot.lane.b32.xlu0 %v697, 64
        %v1162 = vpop.permute.xlu0 %1161
        %1163 = vrot.lane.b32.xlu0 %v703, 64
        %v1164 = vpop.permute.xlu0 %1163
        %1165 = vrot.lane.b32.xlu0 %v709, 64
        %v1166 = vpop.permute.xlu0 %1165
        %1167 = vrot.lane.b32.xlu0 %v715, 64
        %v1168 = vpop.permute.xlu0 %1167
        %1169 = vrot.lane.b32.xlu0 %v721, 64
        %v1170 = vpop.permute.xlu0 %1169
        %1171 = vrot.lane.b32.xlu0 %v727, 64
        %v1172 = vpop.permute.xlu0 %1171
        %1173 = vrot.lane.b32.xlu0 %v733, 64
        %v1174 = vpop.permute.xlu0 %1173
        %1175 = vrot.lane.b32.xlu0 %v739, 64
        %v1176 = vpop.permute.xlu0 %1175
        %1177 = vrot.lane.b32.xlu0 %v745, 64
        %v1178 = vpop.permute.xlu0 %1177
        %1179 = vrot.lane.b32.xlu0 %v751, 64
        %v1180 = vpop.permute.xlu0 %1179
        %1181 = vrot.lane.b32.xlu0 %v757, 64
        %v1182 = vpop.permute.xlu0 %1181
        %1183 = vrot.lane.b32.xlu0 %v763, 64
        %v1184 = vpop.permute.xlu0 %1183
        %1185 = vrot.lane.b32.xlu0 %v769, 64
        %v1186 = vpop.permute.xlu0 %1185
        %1187 = vrot.lane.b32.xlu0 %v775, 64
        %v1188 = vpop.permute.xlu0 %1187
        %1189 = vrot.lane.b32.xlu0 %v781, 64
        %v1190 = vpop.permute.xlu0 %1189
        %1191 = vrot.lane.b32.xlu0 %v787, 64
        %v1192 = vpop.permute.xlu0 %1191
        %v1193 = vmul.f32 %v1162, %v1129
        %v1194 = vmul.f32 %v1164, %v1130
        %v1195 = vmul.f32 %v1166, %v1131
        %v1196 = vmul.f32 %v1168, %v1132
        %v1197 = vmul.f32 %v1170, %v1133
        %v1198 = vmul.f32 %v1172, %v1134
        %v1199 = vmul.f32 %v1174, %v1135
        %v1200 = vmul.f32 %v1176, %v1136
        %v1201 = vmul.f32 %v1178, %v1137
        %v1202 = vmul.f32 %v1180, %v1138
        %v1203 = vmul.f32 %v1182, %v1139
        %v1204 = vmul.f32 %v1184, %v1140
        %v1205 = vmul.f32 %v1186, %v1141
        %v1206 = vmul.f32 %v1188, %v1142
        %v1207 = vmul.f32 %v1190, %v1143
        %v1208 = vmul.f32 %v1192, %v1144
        %v1209 = vadd.f32 %v1145, %v1193
        %v1210 = vadd.f32 %v1146, %v1194
        %v1211 = vadd.f32 %v1147, %v1195
        %v1212 = vadd.f32 %v1148, %v1196
        %v1213 = vadd.f32 %v1149, %v1197
        %v1214 = vadd.f32 %v1150, %v1198
        %v1215 = vadd.f32 %v1151, %v1199
        %v1216 = vadd.f32 %v1152, %v1200
        %v1217 = vadd.f32 %v1153, %v1201
        %v1218 = vadd.f32 %v1154, %v1202
        %v1219 = vadd.f32 %v1155, %v1203
        %v1220 = vadd.f32 %v1156, %v1204
        %v1221 = vadd.f32 %v1157, %v1205
        %v1222 = vadd.f32 %v1158, %v1206
        %v1223 = vadd.f32 %v1159, %v1207
        %v1224 = vadd.f32 %v1160, %v1208
        %v1225 = vmul.f32 %v1209, 0.088388346
        %v1226 = vmul.f32 %v1210, 0.088388346
        %v1227 = vmul.f32 %v1211, 0.088388346
        %v1228 = vmul.f32 %v1212, 0.088388346
        %v1229 = vmul.f32 %v1213, 0.088388346
        %v1230 = vmul.f32 %v1214, 0.088388346
        %v1231 = vmul.f32 %v1215, 0.088388346
        %v1232 = vmul.f32 %v1216, 0.088388346
        %v1233 = vmul.f32 %v1217, 0.088388346
        %v1234 = vmul.f32 %v1218, 0.088388346
        %v1235 = vmul.f32 %v1219, 0.088388346
        %v1236 = vmul.f32 %v1220, 0.088388346
        %v1237 = vmul.f32 %v1221, 0.088388346
        %v1238 = vmul.f32 %v1222, 0.088388346
        %v1239 = vmul.f32 %v1223, 0.088388346
        %v1240 = vmul.f32 %v1224, 0.088388346
        %1241 = vst [vmem:[%s385] sm:$0xff] %v1225
        %1242 = vst [vmem:[%s385 + $0x8] sm:$0xff] %v1226
        %1243 = vst [vmem:[%s385 + $0x10] sm:$0xff] %v1227
        %1244 = vst [vmem:[%s385 + $0x18] sm:$0xff] %v1228
        %1245 = vst [vmem:[%s385 + $0x20] sm:$0xff] %v1229
        %1246 = vst [vmem:[%s385 + $0x28] sm:$0xff] %v1230
        %1247 = vst [vmem:[%s385 + $0x30] sm:$0xff] %v1231
        %1248 = vst [vmem:[%s385 + $0x38] sm:$0xff] %v1232
        %1249 = vst [vmem:[%s385 + $0x40] sm:$0xff] %v1233
        %1250 = vst [vmem:[%s385 + $0x48] sm:$0xff] %v1234
        %1251 = vst [vmem:[%s385 + $0x50] sm:$0xff] %v1235
        %1252 = vst [vmem:[%s385 + $0x58] sm:$0xff] %v1236
        %1253 = vst [vmem:[%s385 + $0x60] sm:$0xff] %v1237
        %1254 = vst [vmem:[%s385 + $0x68] sm:$0xff] %v1238
        %1255 = vst [vmem:[%s385 + $0x70] sm:$0xff] %v1239
        %1256 = vst [vmem:[%s385 + $0x78] sm:$0xff] %v1240
        %v1257 = vmul.f32 %v858, %v1113
        %v1258 = vmul.f32 %v864, %v1114
        %v1259 = vmul.f32 %v870, %v1115
        %v1260 = vmul.f32 %v876, %v1116
        %v1261 = vmul.f32 %v882, %v1117
        %v1262 = vmul.f32 %v888, %v1118
        %v1263 = vmul.f32 %v894, %v1119
        %v1264 = vmul.f32 %v900, %v1120
        %v1265 = vmul.f32 %v906, %v1121
        %v1266 = vmul.f32 %v912, %v1122
        %v1267 = vmul.f32 %v918, %v1123
        %v1268 = vmul.f32 %v924, %v1124
        %v1269 = vmul.f32 %v930, %v1125
        %v1270 = vmul.f32 %v936, %v1126
        %v1271 = vmul.f32 %v942, %v1127
        %v1272 = vmul.f32 %v948, %v1128
        %1273 = vrot.lane.b32.xlu0 %v858, 64
        %v1274 = vpop.permute.xlu0 %1273
        %1275 = vrot.lane.b32.xlu0 %v864, 64
        %v1276 = vpop.permute.xlu0 %1275
        %1277 = vrot.lane.b32.xlu0 %v870, 64
        %v1278 = vpop.permute.xlu0 %1277
        %1279 = vrot.lane.b32.xlu0 %v876, 64
        %v1280 = vpop.permute.xlu0 %1279
        %1281 = vrot.lane.b32.xlu0 %v882, 64
        %v1282 = vpop.permute.xlu0 %1281
        %1283 = vrot.lane.b32.xlu0 %v888, 64
        %v1284 = vpop.permute.xlu0 %1283
        %1285 = vrot.lane.b32.xlu0 %v894, 64
        %v1286 = vpop.permute.xlu0 %1285
        %1287 = vrot.lane.b32.xlu0 %v900, 64
        %v1288 = vpop.permute.xlu0 %1287
        %1289 = vrot.lane.b32.xlu0 %v906, 64
        %v1290 = vpop.permute.xlu0 %1289
        %1291 = vrot.lane.b32.xlu0 %v912, 64
        %v1292 = vpop.permute.xlu0 %1291
        %1293 = vrot.lane.b32.xlu0 %v918, 64
        %v1294 = vpop.permute.xlu0 %1293
        %1295 = vrot.lane.b32.xlu0 %v924, 64
        %v1296 = vpop.permute.xlu0 %1295
        %1297 = vrot.lane.b32.xlu0 %v930, 64
        %v1298 = vpop.permute.xlu0 %1297
        %1299 = vrot.lane.b32.xlu0 %v936, 64
        %v1300 = vpop.permute.xlu0 %1299
        %1301 = vrot.lane.b32.xlu0 %v942, 64
        %v1302 = vpop.permute.xlu0 %1301
        %1303 = vrot.lane.b32.xlu0 %v948, 64
        %v1304 = vpop.permute.xlu0 %1303
        %v1305 = vmul.f32 %v1274, %v1129
        %v1306 = vmul.f32 %v1276, %v1130
        %v1307 = vmul.f32 %v1278, %v1131
        %v1308 = vmul.f32 %v1280, %v1132
        %v1309 = vmul.f32 %v1282, %v1133
        %v1310 = vmul.f32 %v1284, %v1134
        %v1311 = vmul.f32 %v1286, %v1135
        %v1312 = vmul.f32 %v1288, %v1136
        %v1313 = vmul.f32 %v1290, %v1137
        %v1314 = vmul.f32 %v1292, %v1138
        %v1315 = vmul.f32 %v1294, %v1139
        %v1316 = vmul.f32 %v1296, %v1140
        %v1317 = vmul.f32 %v1298, %v1141
        %v1318 = vmul.f32 %v1300, %v1142
        %v1319 = vmul.f32 %v1302, %v1143
        %v1320 = vmul.f32 %v1304, %v1144
        %v1321 = vadd.f32 %v1257, %v1305
        %v1322 = vadd.f32 %v1258, %v1306
        %v1323 = vadd.f32 %v1259, %v1307
        %v1324 = vadd.f32 %v1260, %v1308
        %v1325 = vadd.f32 %v1261, %v1309
        %v1326 = vadd.f32 %v1262, %v1310
        %v1327 = vadd.f32 %v1263, %v1311
        %v1328 = vadd.f32 %v1264, %v1312
        %v1329 = vadd.f32 %v1265, %v1313
        %v1330 = vadd.f32 %v1266, %v1314
        %v1331 = vadd.f32 %v1267, %v1315
        %v1332 = vadd.f32 %v1268, %v1316
        %v1333 = vadd.f32 %v1269, %v1317
        %v1334 = vadd.f32 %v1270, %v1318
        %v1335 = vadd.f32 %v1271, %v1319
        %v1336 = vadd.f32 %v1272, %v1320
        %1337 = vst [vmem:[%s392] sm:$0xff] %v1321
        %1338 = vst [vmem:[%s392 + $0x8] sm:$0xff] %v1322
        %1339 = vst [vmem:[%s392 + $0x10] sm:$0xff] %v1323
        %1340 = vst [vmem:[%s392 + $0x18] sm:$0xff] %v1324
        %1341 = vst [vmem:[%s392 + $0x20] sm:$0xff] %v1325
        %1342 = vst [vmem:[%s392 + $0x28] sm:$0xff] %v1326
        %1343 = vst [vmem:[%s392 + $0x30] sm:$0xff] %v1327
        %1344 = vst [vmem:[%s392 + $0x38] sm:$0xff] %v1328
        %1345 = vst [vmem:[%s392 + $0x40] sm:$0xff] %v1329
        %1346 = vst [vmem:[%s392 + $0x48] sm:$0xff] %v1330
        %1347 = vst [vmem:[%s392 + $0x50] sm:$0xff] %v1331
        %1348 = vst [vmem:[%s392 + $0x58] sm:$0xff] %v1332
        %1349 = vst [vmem:[%s392 + $0x60] sm:$0xff] %v1333
        %1350 = vst [vmem:[%s392 + $0x68] sm:$0xff] %v1334
        %1351 = vst [vmem:[%s392 + $0x70] sm:$0xff] %v1335
        %1352 = vst [vmem:[%s392 + $0x78] sm:$0xff] %v1336
        %1353 = vst [vmem:[%s399] sm:$0xff] %v1019
        %1354 = vst [vmem:[%s399 + $0x8] sm:$0xff] %v1025
        %1355 = vst [vmem:[%s399 + $0x10] sm:$0xff] %v1031
        %1356 = vst [vmem:[%s399 + $0x18] sm:$0xff] %v1037
        %1357 = vst [vmem:[%s399 + $0x20] sm:$0xff] %v1043
        %1358 = vst [vmem:[%s399 + $0x28] sm:$0xff] %v1049
        %1359 = vst [vmem:[%s399 + $0x30] sm:$0xff] %v1055
        %1360 = vst [vmem:[%s399 + $0x38] sm:$0xff] %v1061
        %1361 = vst [vmem:[%s399 + $0x40] sm:$0xff] %v1067
        %1362 = vst [vmem:[%s399 + $0x48] sm:$0xff] %v1073
        %1363 = vst [vmem:[%s399 + $0x50] sm:$0xff] %v1079
        %1364 = vst [vmem:[%s399 + $0x58] sm:$0xff] %v1085
        %1365 = vst [vmem:[%s399 + $0x60] sm:$0xff] %v1091
        %1366 = vst [vmem:[%s399 + $0x68] sm:$0xff] %v1097
        %1367 = vst [vmem:[%s399 + $0x70] sm:$0xff] %v1103
        %1368 = vst [vmem:[%s399 + $0x78] sm:$0xff] %v1109
        %v1369 = vmul.f32 %v699, %v1113
        %v1370 = vmul.f32 %v705, %v1114
        %v1371 = vmul.f32 %v711, %v1115
        %v1372 = vmul.f32 %v717, %v1116
        %v1373 = vmul.f32 %v723, %v1117
        %v1374 = vmul.f32 %v729, %v1118
        %v1375 = vmul.f32 %v735, %v1119
        %v1376 = vmul.f32 %v741, %v1120
        %v1377 = vmul.f32 %v747, %v1121
        %v1378 = vmul.f32 %v753, %v1122
        %v1379 = vmul.f32 %v759, %v1123
        %v1380 = vmul.f32 %v765, %v1124
        %v1381 = vmul.f32 %v771, %v1125
        %v1382 = vmul.f32 %v777, %v1126
        %v1383 = vmul.f32 %v783, %v1127
        %v1384 = vmul.f32 %v789, %v1128
        %1385 = vrot.lane.b32.xlu0 %v699, 64
        %v1386 = vpop.permute.xlu0 %1385
        %1387 = vrot.lane.b32.xlu0 %v705, 64
        %v1388 = vpop.permute.xlu0 %1387
        %1389 = vrot.lane.b32.xlu0 %v711, 64
        %v1390 = vpop.permute.xlu0 %1389
        %1391 = vrot.lane.b32.xlu0 %v717, 64
        %v1392 = vpop.permute.xlu0 %1391
        %1393 = vrot.lane.b32.xlu0 %v723, 64
        %v1394 = vpop.permute.xlu0 %1393
        %1395 = vrot.lane.b32.xlu0 %v729, 64
        %v1396 = vpop.permute.xlu0 %1395
        %1397 = vrot.lane.b32.xlu0 %v735, 64
        %v1398 = vpop.permute.xlu0 %1397
        %1399 = vrot.lane.b32.xlu0 %v741, 64
        %v1400 = vpop.permute.xlu0 %1399
        %1401 = vrot.lane.b32.xlu0 %v747, 64
        %v1402 = vpop.permute.xlu0 %1401
        %1403 = vrot.lane.b32.xlu0 %v753, 64
        %v1404 = vpop.permute.xlu0 %1403
        %1405 = vrot.lane.b32.xlu0 %v759, 64
        %v1406 = vpop.permute.xlu0 %1405
        %1407 = vrot.lane.b32.xlu0 %v765, 64
        %v1408 = vpop.permute.xlu0 %1407
        %1409 = vrot.lane.b32.xlu0 %v771, 64
        %v1410 = vpop.permute.xlu0 %1409
        %1411 = vrot.lane.b32.xlu0 %v777, 64
        %v1412 = vpop.permute.xlu0 %1411
        %1413 = vrot.lane.b32.xlu0 %v783, 64
        %v1414 = vpop.permute.xlu0 %1413
        %1415 = vrot.lane.b32.xlu0 %v789, 64
        %v1416 = vpop.permute.xlu0 %1415
        %v1417 = vmul.f32 %v1386, %v1129
        %v1418 = vmul.f32 %v1388, %v1130
        %v1419 = vmul.f32 %v1390, %v1131
        %v1420 = vmul.f32 %v1392, %v1132
        %v1421 = vmul.f32 %v1394, %v1133
        %v1422 = vmul.f32 %v1396, %v1134
        %v1423 = vmul.f32 %v1398, %v1135
        %v1424 = vmul.f32 %v1400, %v1136
        %v1425 = vmul.f32 %v1402, %v1137
        %v1426 = vmul.f32 %v1404, %v1138
        %v1427 = vmul.f32 %v1406, %v1139
        %v1428 = vmul.f32 %v1408, %v1140
        %v1429 = vmul.f32 %v1410, %v1141
        %v1430 = vmul.f32 %v1412, %v1142
        %v1431 = vmul.f32 %v1414, %v1143
        %v1432 = vmul.f32 %v1416, %v1144
        %v1433 = vadd.f32 %v1369, %v1417
        %v1434 = vadd.f32 %v1370, %v1418
        %v1435 = vadd.f32 %v1371, %v1419
        %v1436 = vadd.f32 %v1372, %v1420
        %v1437 = vadd.f32 %v1373, %v1421
        %v1438 = vadd.f32 %v1374, %v1422
        %v1439 = vadd.f32 %v1375, %v1423
        %v1440 = vadd.f32 %v1376, %v1424
        %v1441 = vadd.f32 %v1377, %v1425
        %v1442 = vadd.f32 %v1378, %v1426
        %v1443 = vadd.f32 %v1379, %v1427
        %v1444 = vadd.f32 %v1380, %v1428
        %v1445 = vadd.f32 %v1381, %v1429
        %v1446 = vadd.f32 %v1382, %v1430
        %v1447 = vadd.f32 %v1383, %v1431
        %v1448 = vadd.f32 %v1384, %v1432
        %v1449 = vmul.f32 %v1433, 0.088388346
        %v1450 = vmul.f32 %v1434, 0.088388346
        %v1451 = vmul.f32 %v1435, 0.088388346
        %v1452 = vmul.f32 %v1436, 0.088388346
        %v1453 = vmul.f32 %v1437, 0.088388346
        %v1454 = vmul.f32 %v1438, 0.088388346
        %v1455 = vmul.f32 %v1439, 0.088388346
        %v1456 = vmul.f32 %v1440, 0.088388346
        %v1457 = vmul.f32 %v1441, 0.088388346
        %v1458 = vmul.f32 %v1442, 0.088388346
        %v1459 = vmul.f32 %v1443, 0.088388346
        %v1460 = vmul.f32 %v1444, 0.088388346
        %v1461 = vmul.f32 %v1445, 0.088388346
        %v1462 = vmul.f32 %v1446, 0.088388346
        %v1463 = vmul.f32 %v1447, 0.088388346
        %v1464 = vmul.f32 %v1448, 0.088388346
        %s1465 = scalar_lea.vmem %s385, 128 [#allocation9]
        %1466 = vst [vmem:[%s1465] sm:$0xff] %v1449
        %1467 = vst [vmem:[%s1465 + $0x8] sm:$0xff] %v1450
        %1468 = vst [vmem:[%s1465 + $0x10] sm:$0xff] %v1451
        %1469 = vst [vmem:[%s1465 + $0x18] sm:$0xff] %v1452
        %1470 = vst [vmem:[%s1465 + $0x20] sm:$0xff] %v1453
        %1471 = vst [vmem:[%s1465 + $0x28] sm:$0xff] %v1454
        %1472 = vst [vmem:[%s1465 + $0x30] sm:$0xff] %v1455
        %1473 = vst [vmem:[%s1465 + $0x38] sm:$0xff] %v1456
        %1474 = vst [vmem:[%s1465 + $0x40] sm:$0xff] %v1457
        %1475 = vst [vmem:[%s1465 + $0x48] sm:$0xff] %v1458
        %1476 = vst [vmem:[%s1465 + $0x50] sm:$0xff] %v1459
        %1477 = vst [vmem:[%s1465 + $0x58] sm:$0xff] %v1460
        %1478 = vst [vmem:[%s1465 + $0x60] sm:$0xff] %v1461
        %1479 = vst [vmem:[%s1465 + $0x68] sm:$0xff] %v1462
        %1480 = vst [vmem:[%s1465 + $0x70] sm:$0xff] %v1463
        %1481 = vst [vmem:[%s1465 + $0x78] sm:$0xff] %v1464
        %v1482 = vmul.f32 %v860, %v1113
        %v1483 = vmul.f32 %v866, %v1114
        %v1484 = vmul.f32 %v872, %v1115
        %v1485 = vmul.f32 %v878, %v1116
        %v1486 = vmul.f32 %v884, %v1117
        %v1487 = vmul.f32 %v890, %v1118
        %v1488 = vmul.f32 %v896, %v1119
        %v1489 = vmul.f32 %v902, %v1120
        %v1490 = vmul.f32 %v908, %v1121
        %v1491 = vmul.f32 %v914, %v1122
        %v1492 = vmul.f32 %v920, %v1123
        %v1493 = vmul.f32 %v926, %v1124
        %v1494 = vmul.f32 %v932, %v1125
        %v1495 = vmul.f32 %v938, %v1126
        %v1496 = vmul.f32 %v944, %v1127
        %v1497 = vmul.f32 %v950, %v1128
        %1498 = vrot.lane.b32.xlu0 %v860, 64
        %v1499 = vpop.permute.xlu0 %1498
        %1500 = vrot.lane.b32.xlu0 %v866, 64
        %v1501 = vpop.permute.xlu0 %1500
        %1502 = vrot.lane.b32.xlu0 %v872, 64
        %v1503 = vpop.permute.xlu0 %1502
        %1504 = vrot.lane.b32.xlu0 %v878, 64
        %v1505 = vpop.permute.xlu0 %1504
        %1506 = vrot.lane.b32.xlu0 %v884, 64
        %v1507 = vpop.permute.xlu0 %1506
        %1508 = vrot.lane.b32.xlu0 %v890, 64
        %v1509 = vpop.permute.xlu0 %1508
        %1510 = vrot.lane.b32.xlu0 %v896, 64
        %v1511 = vpop.permute.xlu0 %1510
        %1512 = vrot.lane.b32.xlu0 %v902, 64
        %v1513 = vpop.permute.xlu0 %1512
        %1514 = vrot.lane.b32.xlu0 %v908, 64
        %v1515 = vpop.permute.xlu0 %1514
        %1516 = vrot.lane.b32.xlu0 %v914, 64
        %v1517 = vpop.permute.xlu0 %1516
        %1518 = vrot.lane.b32.xlu0 %v920, 64
        %v1519 = vpop.permute.xlu0 %1518
        %1520 = vrot.lane.b32.xlu0 %v926, 64
        %v1521 = vpop.permute.xlu0 %1520
        %1522 = vrot.lane.b32.xlu0 %v932, 64
        %v1523 = vpop.permute.xlu0 %1522
        %1524 = vrot.lane.b32.xlu0 %v938, 64
        %v1525 = vpop.permute.xlu0 %1524
        %1526 = vrot.lane.b32.xlu0 %v944, 64
        %v1527 = vpop.permute.xlu0 %1526
        %1528 = vrot.lane.b32.xlu0 %v950, 64
        %v1529 = vpop.permute.xlu0 %1528
        %v1530 = vmul.f32 %v1499, %v1129
        %v1531 = vmul.f32 %v1501, %v1130
        %v1532 = vmul.f32 %v1503, %v1131
        %v1533 = vmul.f32 %v1505, %v1132
        %v1534 = vmul.f32 %v1507, %v1133
        %v1535 = vmul.f32 %v1509, %v1134
        %v1536 = vmul.f32 %v1511, %v1135
        %v1537 = vmul.f32 %v1513, %v1136
        %v1538 = vmul.f32 %v1515, %v1137
        %v1539 = vmul.f32 %v1517, %v1138
        %v1540 = vmul.f32 %v1519, %v1139
        %v1541 = vmul.f32 %v1521, %v1140
        %v1542 = vmul.f32 %v1523, %v1141
        %v1543 = vmul.f32 %v1525, %v1142
        %v1544 = vmul.f32 %v1527, %v1143
        %v1545 = vmul.f32 %v1529, %v1144
        %v1546 = vadd.f32 %v1482, %v1530
        %v1547 = vadd.f32 %v1483, %v1531
        %v1548 = vadd.f32 %v1484, %v1532
        %v1549 = vadd.f32 %v1485, %v1533
        %v1550 = vadd.f32 %v1486, %v1534
        %v1551 = vadd.f32 %v1487, %v1535
        %v1552 = vadd.f32 %v1488, %v1536
        %v1553 = vadd.f32 %v1489, %v1537
        %v1554 = vadd.f32 %v1490, %v1538
        %v1555 = vadd.f32 %v1491, %v1539
        %v1556 = vadd.f32 %v1492, %v1540
        %v1557 = vadd.f32 %v1493, %v1541
        %v1558 = vadd.f32 %v1494, %v1542
        %v1559 = vadd.f32 %v1495, %v1543
        %v1560 = vadd.f32 %v1496, %v1544
        %v1561 = vadd.f32 %v1497, %v1545
        %s1562 = scalar_lea.vmem %s392, 128 [#allocation10]
        %1563 = vst [vmem:[%s1562] sm:$0xff] %v1546
        %1564 = vst [vmem:[%s1562 + $0x8] sm:$0xff] %v1547
        %1565 = vst [vmem:[%s1562 + $0x10] sm:$0xff] %v1548
        %1566 = vst [vmem:[%s1562 + $0x18] sm:$0xff] %v1549
        %1567 = vst [vmem:[%s1562 + $0x20] sm:$0xff] %v1550
        %1568 = vst [vmem:[%s1562 + $0x28] sm:$0xff] %v1551
        %1569 = vst [vmem:[%s1562 + $0x30] sm:$0xff] %v1552
        %1570 = vst [vmem:[%s1562 + $0x38] sm:$0xff] %v1553
        %1571 = vst [vmem:[%s1562 + $0x40] sm:$0xff] %v1554
        %1572 = vst [vmem:[%s1562 + $0x48] sm:$0xff] %v1555
        %1573 = vst [vmem:[%s1562 + $0x50] sm:$0xff] %v1556
        %1574 = vst [vmem:[%s1562 + $0x58] sm:$0xff] %v1557
        %1575 = vst [vmem:[%s1562 + $0x60] sm:$0xff] %v1558
        %1576 = vst [vmem:[%s1562 + $0x68] sm:$0xff] %v1559
        %1577 = vst [vmem:[%s1562 + $0x70] sm:$0xff] %v1560
        %1578 = vst [vmem:[%s1562 + $0x78] sm:$0xff] %v1561
        %s1579 = scalar_lea.vmem %s399, 128 [#allocation12]
        %1580 = vst [vmem:[%s1579] sm:$0xff] %v1021
        %1581 = vst [vmem:[%s1579 + $0x8] sm:$0xff] %v1027
        %1582 = vst [vmem:[%s1579 + $0x10] sm:$0xff] %v1033
        %1583 = vst [vmem:[%s1579 + $0x18] sm:$0xff] %v1039
        %1584 = vst [vmem:[%s1579 + $0x20] sm:$0xff] %v1045
        %1585 = vst [vmem:[%s1579 + $0x28] sm:$0xff] %v1051
        %1586 = vst [vmem:[%s1579 + $0x30] sm:$0xff] %v1057
        %1587 = vst [vmem:[%s1579 + $0x38] sm:$0xff] %v1063
        %1588 = vst [vmem:[%s1579 + $0x40] sm:$0xff] %v1069
        %1589 = vst [vmem:[%s1579 + $0x48] sm:$0xff] %v1075
        %1590 = vst [vmem:[%s1579 + $0x50] sm:$0xff] %v1081
        %1591 = vst [vmem:[%s1579 + $0x58] sm:$0xff] %v1087
        %1592 = vst [vmem:[%s1579 + $0x60] sm:$0xff] %v1093
        %1593 = vst [vmem:[%s1579 + $0x68] sm:$0xff] %v1099
        %1594 = vst [vmem:[%s1579 + $0x70] sm:$0xff] %v1105
        %1595 = vst [vmem:[%s1579 + $0x78] sm:$0xff] %v1111
        %s1596 = sand.u32 %s151, 1
        %s1597 = scalar_lea.sflag [#allocation4], %s1596
        %s1598 = sand.u32 %s151, 1
        %s1599 = smul.addr %s1598, 256
        %s1600 = scalar_lea.vmem [#allocation9], %s1599
        %s1601 = sand.u32 %s28, 1
        %s1602 = scalar_lea.sflag [#allocation11], %s1601
        %s1603 = sand.u32 %s179, 1
        %s1604 = smul.addr %s1603, 256
        %s1605 = scalar_lea.vmem [#allocation10], %s1604
        %s1606 = sand.u32 %s28, 1
        %s1607 = scalar_lea.sflag [#allocation11], %s1606
        %s1608 = sand.u32 %s207, 1
        %s1609 = smul.addr %s1608, 256
        %s1610 = scalar_lea.vmem [#allocation12], %s1609
        // Predicated region
        $region53: #{tpu_custom_call.1} parent=35 // pred_check
          %p1611 = pneg %p161
        $region54: #{tpu_custom_call.1} parent=35 // pred_check_branch
          %1613 = sbr.rel (%p1611) target = $region56
        $region55: #{tpu_custom_call.1} parent=35 // pred_region
          #allocation14 [shape = 'u32[6]{0}', space=smem, size = 0x18, scoped, tag = 'DMA stride descriptor']
          %s1614 = smul.u32 16, %s33
          %s1616 = ssub.s32 4096, 4096
          %1617 = vsyncadd %s1597, %s1616
          %s1618 = smul.addr %s32, 64
          %s1619 = sadd.s32 %s1614, %s1618
          %s1620 = smul.addr %s1619, 128
          %s1621 = scalar_lea.hbm %s4, %s1620
          %s1623 = sshll.u32 1, 14
          %s1624 = sxor.u32 4294967295, %s1623
          %s1627 = sshll.u32 7, 18
          %s1628 = sxor.u32 4294967295, %s1627
          %s1629 = sand.u32 0, %s1628
          %s1631 = sor.u32 %s1629, 0
          %s1632 = sshll.u32 %s1600, 4
          %s1633 = int_to_ptr.vmem [resolvable:$true] %s1632
          %1639 = sst [smem:[#allocation14]] 2048
          %s1640 = scalar_lea.smem [#allocation14], 1
          %1641 = sst [smem:[%s1640]] 4096
          %s1642 = scalar_lea.smem [#allocation14], 2
          %1643 = sst [smem:[%s1642]] 16
          %s1644 = scalar_lea.smem [#allocation14], 3
          %1645 = sst [smem:[%s1644]] 128
          %s1646 = scalar_lea.smem [#allocation14], 4
          %1647 = sst [smem:[%s1646]] 128
          %s1648 = scalar_lea.smem [#allocation14], 5
          %1649 = sst [smem:[%s1648]] 8
          %1651 = dma.general %s1633, 4096, %s1621, %s1597, 131072, [#allocation14], %s1631, 0
        $region56: #{tpu_custom_call.1} parent=35 // pred_fallthru
          _
        // Predicated region
        $region57: #{tpu_custom_call.1} parent=35 // pred_check
          %p1652 = pneg %p189
        $region58: #{tpu_custom_call.1} parent=35 // pred_check_branch
          %1654 = sbr.rel (%p1652) target = $region60
        $region59: #{tpu_custom_call.1} parent=35 // pred_region
          #allocation16 [shape = 'u32[6]{0}', space=smem, size = 0x18, scoped, tag = 'DMA stride descriptor']
          %s1655 = smul.u32 16, %s33
          %s1657 = ssub.s32 4096, 4096
          %1658 = vsyncadd %s1602, %s1657
          %s1659 = smul.addr %s32, 64
          %s1660 = sadd.s32 %s1655, %s1659
          %s1661 = smul.addr %s1660, 128
          %s1662 = scalar_lea.hbm %s5, %s1661
          %s1664 = sshll.u32 1, 14
          %s1665 = sxor.u32 4294967295, %s1664
          %s1668 = sshll.u32 7, 18
          %s1669 = sxor.u32 4294967295, %s1668
          %s1670 = sand.u32 0, %s1669
          %s1672 = sor.u32 %s1670, 0
          %s1673 = sshll.u32 %s1605, 4
          %s1674 = int_to_ptr.vmem [resolvable:$true] %s1673
          %1680 = sst [smem:[#allocation16]] 2048
          %s1681 = scalar_lea.smem [#allocation16], 1
          %1682 = sst [smem:[%s1681]] 4096
          %s1683 = scalar_lea.smem [#allocation16], 2
          %1684 = sst [smem:[%s1683]] 16
          %s1685 = scalar_lea.smem [#allocation16], 3
          %1686 = sst [smem:[%s1685]] 128
          %s1687 = scalar_lea.smem [#allocation16], 4
          %1688 = sst [smem:[%s1687]] 128
          %s1689 = scalar_lea.smem [#allocation16], 5
          %1690 = sst [smem:[%s1689]] 8
          %1692 = dma.general %s1674, 4096, %s1662, %s1602, 131072, [#allocation16], %s1672, 0
        $region60: #{tpu_custom_call.1} parent=35 // pred_fallthru
          _
        // Predicated region
        $region61: #{tpu_custom_call.1} parent=35 // pred_check
          %p1693 = pneg %p217
        $region62: #{tpu_custom_call.1} parent=35 // pred_check_branch
          %1695 = sbr.rel (%p1693) target = $region64
        $region63: #{tpu_custom_call.1} parent=35 // pred_region
          #allocation18 [shape = 'u32[6]{0}', space=smem, size = 0x18, scoped, tag = 'DMA stride descriptor']
          %s1696 = smul.u32 16, %s33
          %s1698 = ssub.s32 4096, 4096
          %1699 = vsyncadd %s1607, %s1698
          %s1700 = smul.addr %s32, 64
          %s1701 = sadd.s32 %s1696, %s1700
          %s1702 = smul.addr %s1701, 128
          %s1703 = scalar_lea.hbm %s6, %s1702
          %s1705 = sshll.u32 1, 14
          %s1706 = sxor.u32 4294967295, %s1705
          %s1709 = sshll.u32 7, 18
          %s1710 = sxor.u32 4294967295, %s1709
          %s1711 = sand.u32 0, %s1710
          %s1713 = sor.u32 %s1711, 0
          %s1714 = sshll.u32 %s1610, 4
          %s1715 = int_to_ptr.vmem [resolvable:$true] %s1714
          %1721 = sst [smem:[#allocation18]] 2048
          %s1722 = scalar_lea.smem [#allocation18], 1
          %1723 = sst [smem:[%s1722]] 4096
          %s1724 = scalar_lea.smem [#allocation18], 2
          %1725 = sst [smem:[%s1724]] 16
          %s1726 = scalar_lea.smem [#allocation18], 3
          %1727 = sst [smem:[%s1726]] 128
          %s1728 = scalar_lea.smem [#allocation18], 4
          %1729 = sst [smem:[%s1728]] 128
          %s1730 = scalar_lea.smem [#allocation18], 5
          %1731 = sst [smem:[%s1730]] 8
          %1733 = dma.general %s1715, 4096, %s1703, %s1607, 131072, [#allocation18], %s1713, 0
        $region64: #{tpu_custom_call.1} parent=35 // pred_fallthru
          _
      $region36: #{tpu_custom_call.1} parent=5 // pred_fallthru
        _
      %p1734 = scmp.le.s32.totalorder 2, %s23
      // Predicated region
      $region65: #{tpu_custom_call.1} parent=5 // pred_check
        %p1735 = pneg %p1734
      $region66: #{tpu_custom_call.1} parent=5 // pred_check_branch
        %1737 = sbr.rel (%p1735) target = $region68
      $region67: #{tpu_custom_call.1} parent=5 // pred_region
        %s1738 = ssub.s32 %s23, 2
        // Predicated region
        $region69: #{tpu_custom_call.1} parent=67 // pred_check
          %p1739 = pneg %p167
        $region70: #{tpu_custom_call.1} parent=67 // pred_check_branch
          %1741 = sbr.rel (%p1739) target = $region72
        $region71: #{tpu_custom_call.1} parent=67 // pred_region
          %s1742 = sand.u32 %s152, 1
          %s1743 = scalar_lea.sflag [#allocation4], %s1742
          %s1744 = sand.u32 %s152, 1
          %s1745 = smul.addr %s1744, 256
          %s1746 = scalar_lea.vmem [#allocation9], %s1745
          %1747 = dma.done %s1743, 4096
        $region72: #{tpu_custom_call.1} parent=67 // pred_fallthru
          _
        // Predicated region
        $region73: #{tpu_custom_call.1} parent=67 // pred_check
          %p1748 = pneg %p195
        $region74: #{tpu_custom_call.1} parent=67 // pred_check_branch
          %1750 = sbr.rel (%p1748) target = $region76
        $region75: #{tpu_custom_call.1} parent=67 // pred_region
          %s1751 = sand.u32 %s29, 1
          %s1752 = scalar_lea.sflag [#allocation11], %s1751
          %s1753 = sand.u32 %s180, 1
          %s1754 = smul.addr %s1753, 256
          %s1755 = scalar_lea.vmem [#allocation10], %s1754
          %1756 = dma.done %s1752, 4096
        $region76: #{tpu_custom_call.1} parent=67 // pred_fallthru
          _
        // Predicated region
        $region77: #{tpu_custom_call.1} parent=67 // pred_check
          %p1757 = pneg %p223
        $region78: #{tpu_custom_call.1} parent=67 // pred_check_branch
          %1759 = sbr.rel (%p1757) target = $region80
        $region79: #{tpu_custom_call.1} parent=67 // pred_region
          %s1760 = sand.u32 %s29, 1
          %s1761 = scalar_lea.sflag [#allocation11], %s1760
          %s1762 = sand.u32 %s208, 1
          %s1763 = smul.addr %s1762, 256
          %s1764 = scalar_lea.vmem [#allocation12], %s1763
          %1765 = dma.done %s1761, 4096
        $region80: #{tpu_custom_call.1} parent=67 // pred_fallthru
          _
      $region68: #{tpu_custom_call.1} parent=5 // pred_fallthru
        _
    $region6: #{tpu_custom_call.1} parent=1 // loop_footer
      %s27 = sadd.s32 1, %s23
    $region7: #{tpu_custom_call.1} parent=1 // loop_footer_branch
      %22 = sbr.rel target = $region3
    $region8: #{tpu_custom_call.1} parent=1 // loop_exit
      _
    %1766 = vsyncpa [#allocation3], 1
    %s1767 = scalar_lea.sflag [#allocation3], 1
    %1768 = vsyncpa %s1767, 1
    %1769 = vsyncpa [#allocation6], 1
    %1770 = vsyncpa [#allocation4], 1
    %s1771 = scalar_lea.sflag [#allocation4], 1
    %1772 = vsyncpa %s1771, 1
    %1773 = vsyncpa [#allocation11], 1
    %s1774 = scalar_lea.sflag [#allocation11], 1
    %1775 = vsyncpa %s1774, 1

</llo_original>
